<compile_context>
chip_gen: v5e
topology: v5e:2x2
jax: 0.10.0
libtpu: 0.0.40
codegen_flags: <defaults>
</compile_context>

<pallas_src>
import functools

import jax
import jax.numpy as jnp
import numpy as np
from jax.experimental import pallas as pl
from jax.experimental.pallas import tpu as pltpu

EPS = 1e-3                      # BatchNorm2d eps=0.001 from the PyTorch module
_MXU_DTYPE = jnp.float32        # set to jnp.bfloat16 for more MXU throughput


def _round_up(x, m):
    return ((x + m - 1) // m) * m


def _fold_bn(gamma, beta, mean, var, cout):
    inv_std = 1.0 / jnp.sqrt(var + EPS)
    scale = (gamma * inv_std).reshape(1, cout).astype(jnp.float32)
    bias = (beta - mean * gamma * inv_std).reshape(1, cout).astype(jnp.float32)
    return scale, bias


# ----------------------------- Pallas kernels ------------------------------


def _stem_kernel(x_ref, w_ref, scale_ref, bias_ref,
                 o1_ref, o5_ref, o3_ref, op_ref, *, c1, c5, c3):
    """Fused 1x1 stems (flat matmul) + folded BN, four branch outputs.

    x_ref:     (TM, Cin)     rows of the flattened NHWC image
    w_ref:     (Cin, Ctot)   concatenated 1x1 weights (b1 | b5_1 | b3_1 | pool)
    scale_ref: (1, Ctot)     gamma / sqrt(var + eps)
    bias_ref:  (1, Ctot)     beta - mean*scale  (ZERO for the pool channels:
                             the pool-branch bias is added after pooling)
    Outputs: branch1x1 / branch5x5_1 / branch3x3dbl_1 get ReLU; the pool
    branch stays linear (pre-activation, pooled + biased + ReLU'd later).
    """
    y = jnp.dot(x_ref[...], w_ref[...], preferred_element_type=jnp.float32)
    y = y * scale_ref[...] + bias_ref[...]
    o1_ref[...] = jnp.maximum(y[:, :c1], 0.0).astype(o1_ref.dtype)
    o5_ref[...] = jnp.maximum(y[:, c1:c1 + c5], 0.0).astype(o5_ref.dtype)
    o3_ref[...] = jnp.maximum(y[:, c1 + c5:c1 + c5 + c3], 0.0).astype(o3_ref.dtype)
    op_ref[...] = y[:, c1 + c5 + c3:].astype(op_ref.dtype)


def _conv_bn_relu_kernel(x_ref, w_ref, scale_ref, bias_ref, o_ref, *, K, TH, W):
    """TH output rows of a KxK 'same' conv + folded BN + ReLU.

    x_ref:     (1, Hp, Wp, Cin)  zero-padded image (one batch elem)
    w_ref:     (K, K*Cin, Cout)  per-kh horizontally-flattened taps
    scale_ref: (1, Cout)
    bias_ref:  (1, Cout)
    o_ref:     (1, TH, W, Cout)
    """
    Cin = x_ref.shape[-1]
    Cout = o_ref.shape[-1]
    h0 = pl.multiple_of(pl.program_id(1) * TH, TH)
    rows = x_ref[0, pl.ds(h0, TH + K - 1), :, :]              # (TH+K-1, Wp, Cin)
    # Hoisted kw-concatenation: built ONCE per tile instead of once per kh.
    patch = jnp.concatenate(
        [rows[:, kw:kw + W, :] for kw in range(K)], axis=-1)  # (TH+K-1, W, K*Cin)
    patch = patch.reshape((TH + K - 1) * W, K * Cin)          # W%8==0 -> aligned
    acc = jnp.zeros((TH * W, Cout), jnp.float32)
    for kh in range(K):    # K dots, contraction K*Cin, M = TH*W rows each
        acc += jnp.dot(patch[kh * W:kh * W + TH * W], w_ref[kh],
                       preferred_element_type=jnp.float32)
    acc = acc * scale_ref[...] + bias_ref[...]                # single epilogue pass
    o_ref[0] = jnp.maximum(acc, 0.0).reshape(TH, W, Cout).astype(o_ref.dtype)


def _avgpool3_bias_relu_kernel(x_ref, bias_ref, o_ref, *, TH, W):
    """3x3 stride-1 average (count_include_pad, /9) + BN bias + ReLU.

    x_ref:    (1, Hp, Wp, C)  zero-padded pool-branch pre-activations
    bias_ref: (1, C)
    o_ref:    (1, TH, W, C)
    """
    h0 = pl.multiple_of(pl.program_id(1) * TH, TH)
    rows = x_ref[0, pl.ds(h0, TH + 2), :, :]                  # (TH+2, Wp, C)
    C = rows.shape[-1]
    s = jnp.zeros((TH, W, C), jnp.float32)
    for kh in range(3):                                       # 9 shifted VPU adds
        for kw in range(3):
            s = s + rows[kh:kh + TH, kw:kw + W, :]
    o_ref[0] = jnp.maximum(s * (1.0 / 9.0) + bias_ref[...], 0.0).astype(o_ref.dtype)


# ----------------------------- Pallas wrappers ------------------------------


def stem_1x1(x2d, w_cat, scale_cat, bias_cat, couts, *, tm=512):
    """x2d: (M, Cin). Fused 1x1 stems; returns 4 arrays (M, c) per branch."""
    M, Cin = x2d.shape
    c1, c5, c3, cp = couts
    ctot = c1 + c5 + c3 + cp
    Mp = _round_up(M, tm)
    if Mp != M:
        x2d = jnp.pad(x2d, ((0, Mp - M), (0, 0)))
    kernel = functools.partial(_stem_kernel, c1=c1, c5=c5, c3=c3)
    outs = pl.pallas_call(
        kernel,
        out_shape=tuple(jax.ShapeDtypeStruct((Mp, c), jnp.float32)
                        for c in (c1, c5, c3, cp)),
        grid=(Mp // tm,),
        in_specs=[
            pl.BlockSpec((tm, Cin), lambda i: (i, 0)),
            pl.BlockSpec((Cin, ctot), lambda i: (0, 0)),
            pl.BlockSpec((1, ctot), lambda i: (0, 0)),
            pl.BlockSpec((1, ctot), lambda i: (0, 0)),
        ],
        out_specs=tuple(pl.BlockSpec((tm, c), lambda i: (i, 0))
                        for c in (c1, c5, c3, cp)),
        compiler_params=pltpu.CompilerParams(dimension_semantics=("parallel",)),
    )(x2d.astype(_MXU_DTYPE), w_cat.astype(_MXU_DTYPE), scale_cat, bias_cat)
    return tuple(o[:M] for o in outs)


def conv_bn_relu(x, w, gamma, beta, mean, var, *, K, th=8):
    """x: (N, H, W, Cin) NHWC, w: (K, K, Cin, Cout). Returns (N, H, W, Cout)."""
    N, H, W, Cin = x.shape
    Cout = w.shape[-1]
    pad = (K - 1) // 2
    scale, bias = _fold_bn(gamma, beta, mean, var, Cout)
    TH = th
    Hp_out = _round_up(H, TH)       # padded output height (cropped afterwards)
    Wp_out = _round_up(W, 8)        # padded output width  (cropped afterwards)
    x = jnp.pad(x, ((0, 0),
                    (pad, pad + Hp_out - H),
                    (pad, pad + Wp_out - W),
                    (0, 0)))
    Hp, Wp = Hp_out + 2 * pad, Wp_out + 2 * pad
    # (K, K, Cin, Cout) -> (K, K*Cin, Cout): kw-major, ci-minor matches the
    # in-kernel channel-axis concatenation of horizontal taps.
    w_r = w.reshape(K, K * Cin, Cout)
    kernel = functools.partial(_conv_bn_relu_kernel, K=K, TH=TH, W=Wp_out)
    out = pl.pallas_call(
        kernel,
        out_shape=jax.ShapeDtypeStruct((N, Hp_out, Wp_out, Cout), jnp.float32),
        grid=(N, Hp_out // TH),
        in_specs=[
            pl.BlockSpec((1, Hp, Wp, Cin), lambda n, h: (n, 0, 0, 0)),
            pl.BlockSpec((K, K * Cin, Cout), lambda n, h: (0, 0, 0)),
            pl.BlockSpec((1, Cout), lambda n, h: (0, 0)),
            pl.BlockSpec((1, Cout), lambda n, h: (0, 0)),
        ],
        out_specs=pl.BlockSpec((1, TH, Wp_out, Cout), lambda n, h: (n, h, 0, 0)),
        compiler_params=pltpu.CompilerParams(
            dimension_semantics=("parallel", "parallel")),
    )(x.astype(_MXU_DTYPE), w_r.astype(_MXU_DTYPE), scale, bias)
    return out[:, :H, :W, :]


def avgpool3_bias_relu(x, bias, *, th=8):
    """x: (N, H, W, C) pool-branch pre-activations (already BN-scaled).
    Computes ReLU(avg_pool3x3_s1_p1(x) + bias)."""
    N, H, W, C = x.shape
    TH = th
    Hp_out = _round_up(H, TH)
    Wp_out = _round_up(W, 8)
    x = jnp.pad(x, ((0, 0), (1, 1 + Hp_out - H), (1, 1 + Wp_out - W), (0, 0)))
    Hp, Wp = Hp_out + 2, Wp_out + 2
    kernel = functools.partial(_avgpool3_bias_relu_kernel, TH=TH, W=Wp_out)
    out = pl.pallas_call(
        kernel,
        out_shape=jax.ShapeDtypeStruct((N, Hp_out, Wp_out, C), jnp.float32),
        grid=(N, Hp_out // TH),
        in_specs=[
            pl.BlockSpec((1, Hp, Wp, C), lambda n, h: (n, 0, 0, 0)),
            pl.BlockSpec((1, C), lambda n, h: (0, 0)),
        ],
        out_specs=pl.BlockSpec((1, TH, Wp_out, C), lambda n, h: (n, h, 0, 0)),
        compiler_params=pltpu.CompilerParams(
            dimension_semantics=("parallel", "parallel")),
    )(x.astype(jnp.float32), bias)
    return out[:, :H, :W, :]


# ----------------------------- parameters ------------------------------


def init_basic_conv(key, cin, cout, K):
    kw_, kg, kb, km, kv = jax.random.split(key, 5)
    fan_in = cin * K * K
    bound = 1.0 / np.sqrt(fan_in)
    w = jax.random.uniform(kw_, (K, K, cin, cout), jnp.float32, -bound, bound)
    # BN params / running stats randomized (instead of PyTorch's 1/0/0/1 init)
    # so the self-test actually exercises the scale/bias folding and its exact
    # placement relative to the pooled branch.
    gamma = jax.random.uniform(kg, (cout,), jnp.float32, 0.5, 1.5)
    beta = 0.2 * jax.random.normal(kb, (cout,), jnp.float32)
    mean = 0.2 * jax.random.normal(km, (cout,), jnp.float32)
    var = jax.random.uniform(kv, (cout,), jnp.float32, 0.5, 1.5)
    return dict(w=w, gamma=gamma, beta=beta, mean=mean, var=var, K=K)


def init_inception_a(key, in_channels, pool_features):
    ks = jax.random.split(key, 7)
    return dict(
        branch1x1=init_basic_conv(ks[0], in_channels, 64, 1),
        branch5x5_1=init_basic_conv(ks[1], in_channels, 48, 1),
        branch5x5_2=init_basic_conv(ks[2], 48, 64, 5),
        branch3x3dbl_1=init_basic_conv(ks[3], in_channels, 64, 1),
        branch3x3dbl_2=init_basic_conv(ks[4], 64, 96, 3),
        branch3x3dbl_3=init_basic_conv(ks[5], 96, 96, 3),
        branch_pool=init_basic_conv(ks[6], in_channels, pool_features, 1),
    )


def _apply_conv(p, x):
    return conv_bn_relu(x, p["w"], p["gamma"], p["beta"], p["mean"], p["var"],
                        K=p["K"])


def inception_a(params, x_nchw):
    x = jnp.transpose(x_nchw, (0, 2, 3, 1)).astype(jnp.float32)  # NCHW -> NHWC
    N, H, W, Cin = x.shape

    # --- fused 1x1 stems: branch1x1 | branch5x5_1 | branch3x3dbl_1 | pool ---
    p1 = params["branch1x1"]
    p5 = params["branch5x5_1"]
    p3 = params["branch3x3dbl_1"]
    pp = params["branch_pool"]
    couts = tuple(p["w"].shape[-1] for p in (p1, p5, p3, pp))
    c1, c5, c3, cp = couts

    w_cat = jnp.concatenate(
        [p["w"].reshape(Cin, p["w"].shape[-1]) for p in (p1, p5, p3, pp)],
        axis=-1)
    scales, biases = [], []
    for p in (p1, p5, p3, pp):
        s, b = _fold_bn(p["gamma"], p["beta"], p["mean"], p["var"],
                        p["w"].shape[-1])
        scales.append(s)
        biases.append(b)
    scale_cat = jnp.concatenate(scales, axis=-1)
    # The pool-branch BN bias must be added AFTER the 3x3 average: with zero
    # padding and /9, pooling and the bias do not commute at the borders.
    bias_cat = jnp.concatenate(biases[:3] + [jnp.zeros_like(biases[3])], axis=-1)

    b1, b5, b3, pb = stem_1x1(x.reshape(N * H * W, Cin), w_cat, scale_cat,
                              bias_cat, couts)
    b1 = b1.reshape(N, H, W, c1)
    b5 = b5.reshape(N, H, W, c5)
    b3 = b3.reshape(N, H, W, c3)
    pb = pb.reshape(N, H, W, cp)

    # --- tail convs (5x5 and double 3x3) ---
    b5 = _apply_conv(params["branch5x5_2"], b5)
    b3 = _apply_conv(params["branch3x3dbl_2"], b3)
    b3 = _apply_conv(params["branch3x3dbl_3"], b3)

    # --- pooled branch: 3x3/9 average on the pre-scaled 1x1 output, then
    #     bias + ReLU (exactly == conv1x1(avgpool(x)) -> BN -> ReLU) ---
    bp = avgpool3_bias_relu(pb, biases[3])

    out = jnp.concatenate([b1, b5, b3, bp], axis=-1)  # == torch.cat(dim=1)
    return jnp.transpose(out, (0, 3, 1, 2))           # NHWC -> NCHW


# ----------------------------- pure-JAX reference ------------------------------


def _ref_conv_bn_relu(p, x):
    pad = (p["K"] - 1) // 2
    y = jax.lax.conv_general_dilated(
        x, p["w"], (1, 1), [(pad, pad), (pad, pad)],
        dimension_numbers=("NHWC", "HWIO", "NHWC"))
    y = (y - p["mean"]) / jnp.sqrt(p["var"] + EPS) * p["gamma"] + p["beta"]
    return jnp.maximum(y, 0.0)


def _ref_avg_pool3(x):
    xp = jnp.pad(x, ((0, 0), (1, 1), (1, 1), (0, 0)))
    s = jax.lax.reduce_window(xp, 0.0, jax.lax.add,
                              (1, 3, 3, 1), (1, 1, 1, 1), "VALID")
    return s / 9.0


def inception_a_ref(params, x_nchw):
    x = jnp.transpose(x_nchw, (0, 2, 3, 1))
    b1 = _ref_conv_bn_relu(params["branch1x1"], x)
    b5 = _ref_conv_bn_relu(params["branch5x5_2"],
                           _ref_conv_bn_relu(params["branch5x5_1"], x))
    b3 = _ref_conv_bn_relu(
        params["branch3x3dbl_3"],
        _ref_conv_bn_relu(params["branch3x3dbl_2"],
                          _ref_conv_bn_relu(params["branch3x3dbl_1"], x)))
    bp = _ref_conv_bn_relu(params["branch_pool"], _ref_avg_pool3(x))
    out = jnp.concatenate([b1, b5, b3, bp], axis=-1)
    return jnp.transpose(out, (0, 3, 1, 2))


# ----------------------------- main ------------------------------


if __name__ == "__main__":
    key = jax.random.PRNGKey(0)
    k_params, k_x = jax.random.split(key)

    in_channels, pool_features = 4, 32
    N, H, W = 2, 16, 16

    params = init_inception_a(k_params, in_channels, pool_features)
    x = jax.random.normal(k_x, (N, in_channels, H, W), jnp.float32)  # NCHW

    out = inception_a(params, x)
    out = jax.block_until_ready(out)
    assert out.shape == (N, 64 + 64 + 96 + pool_features, H, W), out.shape

    ref = inception_a_ref(params, x)
    np.testing.assert_allclose(np.asarray(out), np.asarray(ref),
                               rtol=2e-3, atol=2e-3)

    print("KERNEL_OK")
</pallas_src>

<mosaic_0001>
module attributes {stable_mosaic.version = 11 : i64} {
  func.func @_stem_kernel(%arg0: i32, %arg1: memref<512x4xf32, #tpu.memory_space<vmem>>, %arg2: memref<4x208xf32, #tpu.memory_space<vmem>>, %arg3: memref<1x208xf32, #tpu.memory_space<vmem>>, %arg4: memref<1x208xf32, #tpu.memory_space<vmem>>, %arg5: memref<512x64xf32, #tpu.memory_space<vmem>>, %arg6: memref<512x48xf32, #tpu.memory_space<vmem>>, %arg7: memref<512x64xf32, #tpu.memory_space<vmem>>, %arg8: memref<512x32xf32, #tpu.memory_space<vmem>>) attributes {dimension_semantics = [#tpu.dimension_semantics<parallel>], iteration_bounds = array<i64: 1>, scalar_prefetch = 0 : i64, scratch_operands = 0 : i64, tpu.core_type = #tpu.core_type<tc>, window_params = [{transform_indices = @transform_0, window_bounds = array<i64: 512, 4>}, {pipeline_mode = #tpu.pipeline_mode<synchronous>, transform_indices = @transform_1, window_bounds = array<i64: 4, 208>}, {pipeline_mode = #tpu.pipeline_mode<synchronous>, transform_indices = @transform_2, window_bounds = array<i64: 1, 208>}, {pipeline_mode = #tpu.pipeline_mode<synchronous>, transform_indices = @transform_3, window_bounds = array<i64: 1, 208>}, {transform_indices = @transform_4, window_bounds = array<i64: 512, 64>}, {transform_indices = @transform_5, window_bounds = array<i64: 512, 48>}, {transform_indices = @transform_6, window_bounds = array<i64: 512, 64>}, {transform_indices = @transform_7, window_bounds = array<i64: 512, 32>}]} {
    %c0 = arith.constant 0 : index
    %c0_0 = arith.constant 0 : index
    %0 = vector.load %arg1[%c0, %c0_0] : memref<512x4xf32, #tpu.memory_space<vmem>>, vector<512x4xf32>
    %c0_1 = arith.constant 0 : index
    %c0_2 = arith.constant 0 : index
    %1 = vector.load %arg2[%c0_1, %c0_2] : memref<4x208xf32, #tpu.memory_space<vmem>>, vector<4x208xf32>
    %cst = arith.constant dense<0.000000e+00> : vector<512x208xf32>
    %2 = tpu.matmul %0, %1, %cst {dimension_numbers = #tpu.dot_dimension_numbers<[1], [0], [0], [1], [0, 0, 1, 1], [], []>} : vector<512x4xf32>, vector<4x208xf32>, vector<512x208xf32> -> vector<512x208xf32>
    %c0_3 = arith.constant 0 : index
    %c0_4 = arith.constant 0 : index
    %3 = vector.load %arg3[%c0_3, %c0_4] : memref<1x208xf32, #tpu.memory_space<vmem>>, vector<1x208xf32>
    %4 = vector.broadcast %3 : vector<1x208xf32> to vector<512x208xf32>
    %5 = arith.mulf %2, %4 : vector<512x208xf32>
    %c0_5 = arith.constant 0 : index
    %c0_6 = arith.constant 0 : index
    %6 = vector.load %arg4[%c0_5, %c0_6] : memref<1x208xf32, #tpu.memory_space<vmem>>, vector<1x208xf32>
    %7 = vector.broadcast %6 : vector<1x208xf32> to vector<512x208xf32>
    %8 = arith.addf %5, %7 : vector<512x208xf32>
    %9 = vector.extract_strided_slice %8 {offsets = [0, 0], sizes = [512, 64], strides = [1, 1]} : vector<512x208xf32> to vector<512x64xf32>
    %cst_7 = arith.constant 0.000000e+00 : f32
    %10 = vector.broadcast %cst_7 : f32 to vector<512x64xf32>
    %11 = arith.maximumf %9, %10 : vector<512x64xf32>
    %c0_8 = arith.constant 0 : index
    %c0_9 = arith.constant 0 : index
    %12 = vector.load %arg5[%c0_8, %c0_9] : memref<512x64xf32, #tpu.memory_space<vmem>>, vector<512x64xf32>
    tpu.vector_store %arg5[%c0_8, %c0_9], %11 {strides = array<i32>} : memref<512x64xf32, #tpu.memory_space<vmem>>, vector<512x64xf32>,
    %13 = vector.extract_strided_slice %8 {offsets = [0, 64], sizes = [512, 48], strides = [1, 1]} : vector<512x208xf32> to vector<512x48xf32>
    %cst_10 = arith.constant 0.000000e+00 : f32
    %14 = vector.broadcast %cst_10 : f32 to vector<512x48xf32>
    %15 = arith.maximumf %13, %14 : vector<512x48xf32>
    %c0_11 = arith.constant 0 : index
    %c0_12 = arith.constant 0 : index
    %16 = vector.load %arg6[%c0_11, %c0_12] : memref<512x48xf32, #tpu.memory_space<vmem>>, vector<512x48xf32>
    tpu.vector_store %arg6[%c0_11, %c0_12], %15 {strides = array<i32>} : memref<512x48xf32, #tpu.memory_space<vmem>>, vector<512x48xf32>,
    %17 = vector.extract_strided_slice %8 {offsets = [0, 112], sizes = [512, 64], strides = [1, 1]} : vector<512x208xf32> to vector<512x64xf32>
    %cst_13 = arith.constant 0.000000e+00 : f32
    %18 = vector.broadcast %cst_13 : f32 to vector<512x64xf32>
    %19 = arith.maximumf %17, %18 : vector<512x64xf32>
    %c0_14 = arith.constant 0 : index
    %c0_15 = arith.constant 0 : index
    %20 = vector.load %arg7[%c0_14, %c0_15] : memref<512x64xf32, #tpu.memory_space<vmem>>, vector<512x64xf32>
    tpu.vector_store %arg7[%c0_14, %c0_15], %19 {strides = array<i32>} : memref<512x64xf32, #tpu.memory_space<vmem>>, vector<512x64xf32>,
    %21 = vector.extract_strided_slice %8 {offsets = [0, 176], sizes = [512, 32], strides = [1, 1]} : vector<512x208xf32> to vector<512x32xf32>
    %c0_16 = arith.constant 0 : index
    %c0_17 = arith.constant 0 : index
    %22 = vector.load %arg8[%c0_16, %c0_17] : memref<512x32xf32, #tpu.memory_space<vmem>>, vector<512x32xf32>
    tpu.vector_store %arg8[%c0_16, %c0_17], %21 {strides = array<i32>} : memref<512x32xf32, #tpu.memory_space<vmem>>, vector<512x32xf32>,
    return
  }
  func.func @transform_0(%arg0: i32) -> (i32, i32) {
    %c0_i32 = arith.constant 0 : i32
    %c0_i32_0 = arith.constant 0 : i32
    return %arg0, %c0_i32 : i32, i32
  }
  func.func @transform_1(%arg0: i32) -> (i32, i32) {
    %c0_i32 = arith.constant 0 : i32
    %c0_i32_0 = arith.constant 0 : i32
    %c0_i32_1 = arith.constant 0 : i32
    return %c0_i32, %c0_i32_0 : i32, i32
  }
  func.func @transform_2(%arg0: i32) -> (i32, i32) {
    %c0_i32 = arith.constant 0 : i32
    %c0_i32_0 = arith.constant 0 : i32
    %c0_i32_1 = arith.constant 0 : i32
    return %c0_i32, %c0_i32_0 : i32, i32
  }
  func.func @transform_3(%arg0: i32) -> (i32, i32) {
    %c0_i32 = arith.constant 0 : i32
    %c0_i32_0 = arith.constant 0 : i32
    %c0_i32_1 = arith.constant 0 : i32
    return %c0_i32, %c0_i32_0 : i32, i32
  }
  func.func @transform_4(%arg0: i32) -> (i32, i32) {
    %c0_i32 = arith.constant 0 : i32
    %c0_i32_0 = arith.constant 0 : i32
    return %arg0, %c0_i32 : i32, i32
  }
  func.func @transform_5(%arg0: i32) -> (i32, i32) {
    %c0_i32 = arith.constant 0 : i32
    %c0_i32_0 = arith.constant 0 : i32
    return %arg0, %c0_i32 : i32, i32
  }
  func.func @transform_6(%arg0: i32) -> (i32, i32) {
    %c0_i32 = arith.constant 0 : i32
    %c0_i32_0 = arith.constant 0 : i32
    return %arg0, %c0_i32 : i32, i32
  }
  func.func @transform_7(%arg0: i32) -> (i32, i32) {
    %c0_i32 = arith.constant 0 : i32
    %c0_i32_0 = arith.constant 0 : i32
    return %arg0, %c0_i32 : i32, i32
  }
}

</mosaic_0001>

<llo_original>
// kernel: tpu_custom_call.1
$region0: #{tpu_custom_call.1}
  #allocation0 [shape = 'u32[]', space=smem, size = 0x4, offset = 0x4, fixed_abs, tag = 'smem constant byte address 0x4 - core index']
  #allocation1 [shape = 'u32[72,128]{1,0:T(1,128)}', space=vmem, size = 0x9000, scoped, tag = 'internal scratch']
  %s0 = inlined_call_operand.vmem [shape: f32[512,4], index: 0, kind: input, shape index: {}]
  %s1 = inlined_call_operand.vmem [shape: f32[4,208], index: 1, kind: input, shape index: {}]
  %s2 = inlined_call_operand.vmem [shape: f32[1,208], index: 2, kind: input, shape index: {}]
  %s3 = inlined_call_operand.vmem [shape: f32[1,208], index: 3, kind: input, shape index: {}]
  %s4 = inlined_call_operand.vmem [shape: f32[512,64], index: 4, kind: output, shape index: {0}]
  %s5 = inlined_call_operand.vmem [shape: f32[512,48], index: 5, kind: output, shape index: {1}]
  %s6 = inlined_call_operand.vmem [shape: f32[512,64], index: 6, kind: output, shape index: {2}]
  %s7 = inlined_call_operand.vmem [shape: f32[512,32], index: 7, kind: output, shape index: {3}]
  %8 = xla_tuple %s4, %s5, %s6, %s7
  %s9 = sld [smem:[#allocation0]]
  $region50: #{tpu_custom_call.1} parent=0
    _
  %s11 = ssub.s32 1, %s9
  %s12 = scalar_select 0, %s11, %s9
  // Predicated region
  $region2: #{tpu_custom_call.1} parent=0 // pred_check
    _
  $region3: #{tpu_custom_call.1} parent=0 // pred_check_branch
    %14 = sbr.rel (0) target = $region5
  $region4: #{tpu_custom_call.1} parent=0 // pred_region
    _
  $region5: #{tpu_custom_call.1} parent=0 // pred_fallthru
    _
  // Predicated region
  $region6: #{tpu_custom_call.1} parent=0 // pred_check
    _
  $region7: #{tpu_custom_call.1} parent=0 // pred_check_branch
    %16 = sbr.rel (0) target = $region9
  $region8: #{tpu_custom_call.1} parent=0 // pred_region
    _
  $region9: #{tpu_custom_call.1} parent=0 // pred_fallthru
    _
  // Predicated region
  $region10: #{tpu_custom_call.1} parent=0 // pred_check
    _
  $region11: #{tpu_custom_call.1} parent=0 // pred_check_branch
    %18 = sbr.rel (0) target = $region13
  $region12: #{tpu_custom_call.1} parent=0 // pred_region
    _
  $region13: #{tpu_custom_call.1} parent=0 // pred_fallthru
    _
  // Predicated region
  $region14: #{tpu_custom_call.1} parent=0 // pred_check
    _
  $region15: #{tpu_custom_call.1} parent=0 // pred_check_branch
    %20 = sbr.rel (0) target = $region17
  $region16: #{tpu_custom_call.1} parent=0 // pred_region
    _
  $region17: #{tpu_custom_call.1} parent=0 // pred_fallthru
    _
  %v21 = vld [vmem:[%s0] sm:$0xff]
  %v22 = vld [vmem:[%s0 + $0x8] sm:$0xff]
  %v23 = vld [vmem:[%s0 + $0x10] sm:$0xff]
  %v24 = vld [vmem:[%s0 + $0x18] sm:$0xff]
  %v25 = vld [vmem:[%s0 + $0x20] sm:$0xff]
  %v26 = vld [vmem:[%s0 + $0x28] sm:$0xff]
  %v27 = vld [vmem:[%s0 + $0x30] sm:$0xff]
  %v28 = vld [vmem:[%s0 + $0x38] sm:$0xff]
  %v29 = vld [vmem:[%s0 + $0x40] sm:$0xff]
  %v30 = vld [vmem:[%s0 + $0x48] sm:$0xff]
  %v31 = vld [vmem:[%s0 + $0x50] sm:$0xff]
  %v32 = vld [vmem:[%s0 + $0x58] sm:$0xff]
  %v33 = vld [vmem:[%s0 + $0x60] sm:$0xff]
  %v34 = vld [vmem:[%s0 + $0x68] sm:$0xff]
  %v35 = vld [vmem:[%s0 + $0x70] sm:$0xff]
  %v36 = vld [vmem:[%s0 + $0x78] sm:$0xff]
  %v37 = vld [vmem:[%s0 + $0x80] sm:$0xff]
  %v38 = vld [vmem:[%s0 + $0x88] sm:$0xff]
  %v39 = vld [vmem:[%s0 + $0x90] sm:$0xff]
  %v40 = vld [vmem:[%s0 + $0x98] sm:$0xff]
  %v41 = vld [vmem:[%s0 + $0xa0] sm:$0xff]
  %v42 = vld [vmem:[%s0 + $0xa8] sm:$0xff]
  %v43 = vld [vmem:[%s0 + $0xb0] sm:$0xff]
  %v44 = vld [vmem:[%s0 + $0xb8] sm:$0xff]
  %v45 = vld [vmem:[%s0 + $0xc0] sm:$0xff]
  %v46 = vld [vmem:[%s0 + $0xc8] sm:$0xff]
  %v47 = vld [vmem:[%s0 + $0xd0] sm:$0xff]
  %v48 = vld [vmem:[%s0 + $0xd8] sm:$0xff]
  %v49 = vld [vmem:[%s0 + $0xe0] sm:$0xff]
  %v50 = vld [vmem:[%s0 + $0xe8] sm:$0xff]
  %v51 = vld [vmem:[%s0 + $0xf0] sm:$0xff]
  %v52 = vld [vmem:[%s0 + $0xf8] sm:$0xff]
  %v53 = vld [vmem:[%s0 + $0x100] sm:$0xff]
  %v54 = vld [vmem:[%s0 + $0x108] sm:$0xff]
  %v55 = vld [vmem:[%s0 + $0x110] sm:$0xff]
  %v56 = vld [vmem:[%s0 + $0x118] sm:$0xff]
  %v57 = vld [vmem:[%s0 + $0x120] sm:$0xff]
  %v58 = vld [vmem:[%s0 + $0x128] sm:$0xff]
  %v59 = vld [vmem:[%s0 + $0x130] sm:$0xff]
  %v60 = vld [vmem:[%s0 + $0x138] sm:$0xff]
  %v61 = vld [vmem:[%s0 + $0x140] sm:$0xff]
  %v62 = vld [vmem:[%s0 + $0x148] sm:$0xff]
  %v63 = vld [vmem:[%s0 + $0x150] sm:$0xff]
  %v64 = vld [vmem:[%s0 + $0x158] sm:$0xff]
  %v65 = vld [vmem:[%s0 + $0x160] sm:$0xff]
  %v66 = vld [vmem:[%s0 + $0x168] sm:$0xff]
  %v67 = vld [vmem:[%s0 + $0x170] sm:$0xff]
  %v68 = vld [vmem:[%s0 + $0x178] sm:$0xff]
  %v69 = vld [vmem:[%s0 + $0x180] sm:$0xff]
  %v70 = vld [vmem:[%s0 + $0x188] sm:$0xff]
  %v71 = vld [vmem:[%s0 + $0x190] sm:$0xff]
  %v72 = vld [vmem:[%s0 + $0x198] sm:$0xff]
  %v73 = vld [vmem:[%s0 + $0x1a0] sm:$0xff]
  %v74 = vld [vmem:[%s0 + $0x1a8] sm:$0xff]
  %v75 = vld [vmem:[%s0 + $0x1b0] sm:$0xff]
  %v76 = vld [vmem:[%s0 + $0x1b8] sm:$0xff]
  %v77 = vld [vmem:[%s0 + $0x1c0] sm:$0xff]
  %v78 = vld [vmem:[%s0 + $0x1c8] sm:$0xff]
  %v79 = vld [vmem:[%s0 + $0x1d0] sm:$0xff]
  %v80 = vld [vmem:[%s0 + $0x1d8] sm:$0xff]
  %v81 = vld [vmem:[%s0 + $0x1e0] sm:$0xff]
  %v82 = vld [vmem:[%s0 + $0x1e8] sm:$0xff]
  %v83 = vld [vmem:[%s0 + $0x1f0] sm:$0xff]
  %v84 = vld [vmem:[%s0 + $0x1f8] sm:$0xff]
  %v85 = vld [vmem:[%s1] sm:$0xff]
  %87 = vst [vmem:[#allocation1] ss:$2 sm:$0xff] %v85
  %v88 = vld.sshfl [vmem:[#allocation1] sm:$0xff pattern:$0x75316420]
  %v89 = vld.sshfl [vmem:[#allocation1 + $0x8] sm:$0xff pattern:$0x75316420]
  %vm90 = vcmask 31744
  %v92 = vsel %vm90, %v21, 0
  %v95 = vsel %vm90, %v22, 0
  %v98 = vsel %vm90, %v23, 0
  %v101 = vsel %vm90, %v24, 0
  %v104 = vsel %vm90, %v25, 0
  %v107 = vsel %vm90, %v26, 0
  %v110 = vsel %vm90, %v27, 0
  %v113 = vsel %vm90, %v28, 0
  %v116 = vsel %vm90, %v29, 0
  %v119 = vsel %vm90, %v30, 0
  %v122 = vsel %vm90, %v31, 0
  %v125 = vsel %vm90, %v32, 0
  %v128 = vsel %vm90, %v33, 0
  %v131 = vsel %vm90, %v34, 0
  %v134 = vsel %vm90, %v35, 0
  %v137 = vsel %vm90, %v36, 0
  %v140 = vsel %vm90, %v37, 0
  %v143 = vsel %vm90, %v38, 0
  %v146 = vsel %vm90, %v39, 0
  %v149 = vsel %vm90, %v40, 0
  %v152 = vsel %vm90, %v41, 0
  %v155 = vsel %vm90, %v42, 0
  %v158 = vsel %vm90, %v43, 0
  %v161 = vsel %vm90, %v44, 0
  %v164 = vsel %vm90, %v45, 0
  %v167 = vsel %vm90, %v46, 0
  %v170 = vsel %vm90, %v47, 0
  %v173 = vsel %vm90, %v48, 0
  %v176 = vsel %vm90, %v49, 0
  %v179 = vsel %vm90, %v50, 0
  %v182 = vsel %vm90, %v51, 0
  %v185 = vsel %vm90, %v52, 0
  %v188 = vsel %vm90, %v53, 0
  %v191 = vsel %vm90, %v54, 0
  %v194 = vsel %vm90, %v55, 0
  %v197 = vsel %vm90, %v56, 0
  %v200 = vsel %vm90, %v57, 0
  %v203 = vsel %vm90, %v58, 0
  %v206 = vsel %vm90, %v59, 0
  %v209 = vsel %vm90, %v60, 0
  %v212 = vsel %vm90, %v61, 0
  %v215 = vsel %vm90, %v62, 0
  %v218 = vsel %vm90, %v63, 0
  %v221 = vsel %vm90, %v64, 0
  %v224 = vsel %vm90, %v65, 0
  %v227 = vsel %vm90, %v66, 0
  %v230 = vsel %vm90, %v67, 0
  %v233 = vsel %vm90, %v68, 0
  %v236 = vsel %vm90, %v69, 0
  %v239 = vsel %vm90, %v70, 0
  %v242 = vsel %vm90, %v71, 0
  %v245 = vsel %vm90, %v72, 0
  %v248 = vsel %vm90, %v73, 0
  %v251 = vsel %vm90, %v74, 0
  %v254 = vsel %vm90, %v75, 0
  %v257 = vsel %vm90, %v76, 0
  %v260 = vsel %vm90, %v77, 0
  %v263 = vsel %vm90, %v78, 0
  %v266 = vsel %vm90, %v79, 0
  %v269 = vsel %vm90, %v80, 0
  %v272 = vsel %vm90, %v81, 0
  %v275 = vsel %vm90, %v82, 0
  %v278 = vsel %vm90, %v83, 0
  %v281 = vsel %vm90, %v84, 0
  %vm283 = vcmask 1043456
  %v284 = vsel %vm283, %v88, 0
  %v286 = vsel %vm283, %v89, 0
  %288 = vmatpush.msra.mxu0 0.0
  %289 = vmatpush.msra.mxu0 0.0
  %290 = vmatpush.msra.mxu0 0.0
  %291 = vmatpush.msra.mxu0 0.0
  %292 = vmatpush.msra.mxu0 0.0
  %293 = vmatpush.msra.mxu0 0.0
  %294 = vmatpush.msra.mxu0 0.0
  %295 = vmatpush.msra.mxu0 0.0
  %296 = vmatpush.msra.mxu0 0.0
  %297 = vmatpush.msra.mxu0 0.0
  %298 = vmatpush.msra.mxu0 0.0
  %299 = vmatpush.msra.mxu0 0.0
  %300 = vmatpush.msra.mxu0 0.0
  %301 = vmatpush.msra.mxu0 0.0
  %302 = vmatpush.msra.mxu0 0.0
  %303 = vmatpush.msra.mxu0 %v284
  %304 = vmatmul.f32.gmra.mxu0 %v92
  %v305 = vpop.f32.mrf.mxu0
  %v306 = vadd.f32 0.0, %v305
  %307 = vmatmul.f32.gmra.mxu0 %v95
  %v308 = vpop.f32.mrf.mxu0
  %v309 = vadd.f32 0.0, %v308
  %310 = vmatmul.f32.gmra.mxu0 %v98
  %v311 = vpop.f32.mrf.mxu0
  %v312 = vadd.f32 0.0, %v311
  %313 = vmatmul.f32.gmra.mxu0 %v101
  %v314 = vpop.f32.mrf.mxu0
  %v315 = vadd.f32 0.0, %v314
  %316 = vmatmul.f32.gmra.mxu0 %v104
  %v317 = vpop.f32.mrf.mxu0
  %v318 = vadd.f32 0.0, %v317
  %319 = vmatmul.f32.gmra.mxu0 %v107
  %v320 = vpop.f32.mrf.mxu0
  %v321 = vadd.f32 0.0, %v320
  %322 = vmatmul.f32.gmra.mxu0 %v110
  %v323 = vpop.f32.mrf.mxu0
  %v324 = vadd.f32 0.0, %v323
  %325 = vmatmul.f32.gmra.mxu0 %v113
  %v326 = vpop.f32.mrf.mxu0
  %v327 = vadd.f32 0.0, %v326
  %328 = vmatmul.f32.gmra.mxu0 %v116
  %v329 = vpop.f32.mrf.mxu0
  %v330 = vadd.f32 0.0, %v329
  %331 = vmatmul.f32.gmra.mxu0 %v119
  %v332 = vpop.f32.mrf.mxu0
  %v333 = vadd.f32 0.0, %v332
  %334 = vmatmul.f32.gmra.mxu0 %v122
  %v335 = vpop.f32.mrf.mxu0
  %v336 = vadd.f32 0.0, %v335
  %337 = vmatmul.f32.gmra.mxu0 %v125
  %v338 = vpop.f32.mrf.mxu0
  %v339 = vadd.f32 0.0, %v338
  %340 = vmatmul.f32.gmra.mxu0 %v128
  %v341 = vpop.f32.mrf.mxu0
  %v342 = vadd.f32 0.0, %v341
  %343 = vmatmul.f32.gmra.mxu0 %v131
  %v344 = vpop.f32.mrf.mxu0
  %v345 = vadd.f32 0.0, %v344
  %346 = vmatmul.f32.gmra.mxu0 %v134
  %v347 = vpop.f32.mrf.mxu0
  %v348 = vadd.f32 0.0, %v347
  %349 = vmatmul.f32.gmra.mxu0 %v137
  %v350 = vpop.f32.mrf.mxu0
  %v351 = vadd.f32 0.0, %v350
  %352 = vmatmul.f32.gmra.mxu0 %v140
  %v353 = vpop.f32.mrf.mxu0
  %v354 = vadd.f32 0.0, %v353
  %355 = vmatmul.f32.gmra.mxu0 %v143
  %v356 = vpop.f32.mrf.mxu0
  %v357 = vadd.f32 0.0, %v356
  %358 = vmatmul.f32.gmra.mxu0 %v146
  %v359 = vpop.f32.mrf.mxu0
  %v360 = vadd.f32 0.0, %v359
  %361 = vmatmul.f32.gmra.mxu0 %v149
  %v362 = vpop.f32.mrf.mxu0
  %v363 = vadd.f32 0.0, %v362
  %364 = vmatmul.f32.gmra.mxu0 %v152
  %v365 = vpop.f32.mrf.mxu0
  %v366 = vadd.f32 0.0, %v365
  %367 = vmatmul.f32.gmra.mxu0 %v155
  %v368 = vpop.f32.mrf.mxu0
  %v369 = vadd.f32 0.0, %v368
  %370 = vmatmul.f32.gmra.mxu0 %v158
  %v371 = vpop.f32.mrf.mxu0
  %v372 = vadd.f32 0.0, %v371
  %373 = vmatmul.f32.gmra.mxu0 %v161
  %v374 = vpop.f32.mrf.mxu0
  %v375 = vadd.f32 0.0, %v374
  %376 = vmatmul.f32.gmra.mxu0 %v164
  %v377 = vpop.f32.mrf.mxu0
  %v378 = vadd.f32 0.0, %v377
  %379 = vmatmul.f32.gmra.mxu0 %v167
  %v380 = vpop.f32.mrf.mxu0
  %v381 = vadd.f32 0.0, %v380
  %382 = vmatmul.f32.gmra.mxu0 %v170
  %v383 = vpop.f32.mrf.mxu0
  %v384 = vadd.f32 0.0, %v383
  %385 = vmatmul.f32.gmra.mxu0 %v173
  %v386 = vpop.f32.mrf.mxu0
  %v387 = vadd.f32 0.0, %v386
  %388 = vmatmul.f32.gmra.mxu0 %v176
  %v389 = vpop.f32.mrf.mxu0
  %v390 = vadd.f32 0.0, %v389
  %391 = vmatmul.f32.gmra.mxu0 %v179
  %v392 = vpop.f32.mrf.mxu0
  %v393 = vadd.f32 0.0, %v392
  %394 = vmatmul.f32.gmra.mxu0 %v182
  %v395 = vpop.f32.mrf.mxu0
  %v396 = vadd.f32 0.0, %v395
  %397 = vmatmul.f32.gmra.mxu0 %v185
  %v398 = vpop.f32.mrf.mxu0
  %v399 = vadd.f32 0.0, %v398
  %400 = vmatmul.f32.gmra.mxu0 %v188
  %v401 = vpop.f32.mrf.mxu0
  %v402 = vadd.f32 0.0, %v401
  %403 = vmatmul.f32.gmra.mxu0 %v191
  %v404 = vpop.f32.mrf.mxu0
  %v405 = vadd.f32 0.0, %v404
  %406 = vmatmul.f32.gmra.mxu0 %v194
  %v407 = vpop.f32.mrf.mxu0
  %v408 = vadd.f32 0.0, %v407
  %409 = vmatmul.f32.gmra.mxu0 %v197
  %v410 = vpop.f32.mrf.mxu0
  %v411 = vadd.f32 0.0, %v410
  %412 = vmatmul.f32.gmra.mxu0 %v200
  %v413 = vpop.f32.mrf.mxu0
  %v414 = vadd.f32 0.0, %v413
  %415 = vmatmul.f32.gmra.mxu0 %v203
  %v416 = vpop.f32.mrf.mxu0
  %v417 = vadd.f32 0.0, %v416
  %418 = vmatmul.f32.gmra.mxu0 %v206
  %v419 = vpop.f32.mrf.mxu0
  %v420 = vadd.f32 0.0, %v419
  %421 = vmatmul.f32.gmra.mxu0 %v209
  %v422 = vpop.f32.mrf.mxu0
  %v423 = vadd.f32 0.0, %v422
  %424 = vmatmul.f32.gmra.mxu0 %v212
  %v425 = vpop.f32.mrf.mxu0
  %v426 = vadd.f32 0.0, %v425
  %427 = vmatmul.f32.gmra.mxu0 %v215
  %v428 = vpop.f32.mrf.mxu0
  %v429 = vadd.f32 0.0, %v428
  %430 = vmatmul.f32.gmra.mxu0 %v218
  %v431 = vpop.f32.mrf.mxu0
  %v432 = vadd.f32 0.0, %v431
  %433 = vmatmul.f32.gmra.mxu0 %v221
  %v434 = vpop.f32.mrf.mxu0
  %v435 = vadd.f32 0.0, %v434
  %436 = vmatmul.f32.gmra.mxu0 %v224
  %v437 = vpop.f32.mrf.mxu0
  %v438 = vadd.f32 0.0, %v437
  %439 = vmatmul.f32.gmra.mxu0 %v227
  %v440 = vpop.f32.mrf.mxu0
  %v441 = vadd.f32 0.0, %v440
  %442 = vmatmul.f32.gmra.mxu0 %v230
  %v443 = vpop.f32.mrf.mxu0
  %v444 = vadd.f32 0.0, %v443
  %445 = vmatmul.f32.gmra.mxu0 %v233
  %v446 = vpop.f32.mrf.mxu0
  %v447 = vadd.f32 0.0, %v446
  %448 = vmatmul.f32.gmra.mxu0 %v236
  %v449 = vpop.f32.mrf.mxu0
  %v450 = vadd.f32 0.0, %v449
  %451 = vmatmul.f32.gmra.mxu0 %v239
  %v452 = vpop.f32.mrf.mxu0
  %v453 = vadd.f32 0.0, %v452
  %454 = vmatmul.f32.gmra.mxu0 %v242
  %v455 = vpop.f32.mrf.mxu0
  %v456 = vadd.f32 0.0, %v455
  %457 = vmatmul.f32.gmra.mxu0 %v245
  %v458 = vpop.f32.mrf.mxu0
  %v459 = vadd.f32 0.0, %v458
  %460 = vmatmul.f32.gmra.mxu0 %v248
  %v461 = vpop.f32.mrf.mxu0
  %v462 = vadd.f32 0.0, %v461
  %463 = vmatmul.f32.gmra.mxu0 %v251
  %v464 = vpop.f32.mrf.mxu0
  %v465 = vadd.f32 0.0, %v464
  %466 = vmatmul.f32.gmra.mxu0 %v254
  %v467 = vpop.f32.mrf.mxu0
  %v468 = vadd.f32 0.0, %v467
  %469 = vmatmul.f32.gmra.mxu0 %v257
  %v470 = vpop.f32.mrf.mxu0
  %v471 = vadd.f32 0.0, %v470
  %472 = vmatmul.f32.gmra.mxu0 %v260
  %v473 = vpop.f32.mrf.mxu0
  %v474 = vadd.f32 0.0, %v473
  %475 = vmatmul.f32.gmra.mxu0 %v263
  %v476 = vpop.f32.mrf.mxu0
  %v477 = vadd.f32 0.0, %v476
  %478 = vmatmul.f32.gmra.mxu0 %v266
  %v479 = vpop.f32.mrf.mxu0
  %v480 = vadd.f32 0.0, %v479
  %481 = vmatmul.f32.gmra.mxu0 %v269
  %v482 = vpop.f32.mrf.mxu0
  %v483 = vadd.f32 0.0, %v482
  %484 = vmatmul.f32.gmra.mxu0 %v272
  %v485 = vpop.f32.mrf.mxu0
  %v486 = vadd.f32 0.0, %v485
  %487 = vmatmul.f32.gmra.mxu0 %v275
  %v488 = vpop.f32.mrf.mxu0
  %v489 = vadd.f32 0.0, %v488
  %490 = vmatmul.f32.gmra.mxu0 %v278
  %v491 = vpop.f32.mrf.mxu0
  %v492 = vadd.f32 0.0, %v491
  %493 = vmatmul.f32.gmra.mxu0 %v281
  %v494 = vpop.f32.mrf.mxu0
  %v495 = vadd.f32 0.0, %v494
  %496 = vdwg.mxu0
  %497 = vmatpush.msra.mxu0 0.0
  %498 = vmatpush.msra.mxu0 0.0
  %499 = vmatpush.msra.mxu0 0.0
  %500 = vmatpush.msra.mxu0 0.0
  %501 = vmatpush.msra.mxu0 0.0
  %502 = vmatpush.msra.mxu0 0.0
  %503 = vmatpush.msra.mxu0 0.0
  %504 = vmatpush.msra.mxu0 0.0
  %505 = vmatpush.msra.mxu0 0.0
  %506 = vmatpush.msra.mxu0 0.0
  %507 = vmatpush.msra.mxu0 0.0
  %508 = vmatpush.msra.mxu0 0.0
  %509 = vmatpush.msra.mxu0 0.0
  %510 = vmatpush.msra.mxu0 0.0
  %511 = vmatpush.msra.mxu0 0.0
  %512 = vmatpush.msra.mxu0 %v286
  %513 = vmatmul.f32.gmra.mxu0 %v92
  %v514 = vpop.f32.mrf.mxu0
  %v515 = vadd.f32 0.0, %v514
  %516 = vmatmul.f32.gmra.mxu0 %v95
  %v517 = vpop.f32.mrf.mxu0
  %v518 = vadd.f32 0.0, %v517
  %519 = vmatmul.f32.gmra.mxu0 %v98
  %v520 = vpop.f32.mrf.mxu0
  %v521 = vadd.f32 0.0, %v520
  %522 = vmatmul.f32.gmra.mxu0 %v101
  %v523 = vpop.f32.mrf.mxu0
  %v524 = vadd.f32 0.0, %v523
  %525 = vmatmul.f32.gmra.mxu0 %v104
  %v526 = vpop.f32.mrf.mxu0
  %v527 = vadd.f32 0.0, %v526
  %528 = vmatmul.f32.gmra.mxu0 %v107
  %v529 = vpop.f32.mrf.mxu0
  %v530 = vadd.f32 0.0, %v529
  %531 = vmatmul.f32.gmra.mxu0 %v110
  %v532 = vpop.f32.mrf.mxu0
  %v533 = vadd.f32 0.0, %v532
  %534 = vmatmul.f32.gmra.mxu0 %v113
  %v535 = vpop.f32.mrf.mxu0
  %v536 = vadd.f32 0.0, %v535
  %537 = vmatmul.f32.gmra.mxu0 %v116
  %v538 = vpop.f32.mrf.mxu0
  %v539 = vadd.f32 0.0, %v538
  %540 = vmatmul.f32.gmra.mxu0 %v119
  %v541 = vpop.f32.mrf.mxu0
  %v542 = vadd.f32 0.0, %v541
  %543 = vmatmul.f32.gmra.mxu0 %v122
  %v544 = vpop.f32.mrf.mxu0
  %v545 = vadd.f32 0.0, %v544
  %546 = vmatmul.f32.gmra.mxu0 %v125
  %v547 = vpop.f32.mrf.mxu0
  %v548 = vadd.f32 0.0, %v547
  %549 = vmatmul.f32.gmra.mxu0 %v128
  %v550 = vpop.f32.mrf.mxu0
  %v551 = vadd.f32 0.0, %v550
  %552 = vmatmul.f32.gmra.mxu0 %v131
  %v553 = vpop.f32.mrf.mxu0
  %v554 = vadd.f32 0.0, %v553
  %555 = vmatmul.f32.gmra.mxu0 %v134
  %v556 = vpop.f32.mrf.mxu0
  %v557 = vadd.f32 0.0, %v556
  %558 = vmatmul.f32.gmra.mxu0 %v137
  %v559 = vpop.f32.mrf.mxu0
  %v560 = vadd.f32 0.0, %v559
  %561 = vmatmul.f32.gmra.mxu0 %v140
  %v562 = vpop.f32.mrf.mxu0
  %v563 = vadd.f32 0.0, %v562
  %564 = vmatmul.f32.gmra.mxu0 %v143
  %v565 = vpop.f32.mrf.mxu0
  %v566 = vadd.f32 0.0, %v565
  %567 = vmatmul.f32.gmra.mxu0 %v146
  %v568 = vpop.f32.mrf.mxu0
  %v569 = vadd.f32 0.0, %v568
  %570 = vmatmul.f32.gmra.mxu0 %v149
  %v571 = vpop.f32.mrf.mxu0
  %v572 = vadd.f32 0.0, %v571
  %573 = vmatmul.f32.gmra.mxu0 %v152
  %v574 = vpop.f32.mrf.mxu0
  %v575 = vadd.f32 0.0, %v574
  %576 = vmatmul.f32.gmra.mxu0 %v155
  %v577 = vpop.f32.mrf.mxu0
  %v578 = vadd.f32 0.0, %v577
  %579 = vmatmul.f32.gmra.mxu0 %v158
  %v580 = vpop.f32.mrf.mxu0
  %v581 = vadd.f32 0.0, %v580
  %582 = vmatmul.f32.gmra.mxu0 %v161
  %v583 = vpop.f32.mrf.mxu0
  %v584 = vadd.f32 0.0, %v583
  %585 = vmatmul.f32.gmra.mxu0 %v164
  %v586 = vpop.f32.mrf.mxu0
  %v587 = vadd.f32 0.0, %v586
  %588 = vmatmul.f32.gmra.mxu0 %v167
  %v589 = vpop.f32.mrf.mxu0
  %v590 = vadd.f32 0.0, %v589
  %591 = vmatmul.f32.gmra.mxu0 %v170
  %v592 = vpop.f32.mrf.mxu0
  %v593 = vadd.f32 0.0, %v592
  %594 = vmatmul.f32.gmra.mxu0 %v173
  %v595 = vpop.f32.mrf.mxu0
  %v596 = vadd.f32 0.0, %v595
  %597 = vmatmul.f32.gmra.mxu0 %v176
  %v598 = vpop.f32.mrf.mxu0
  %v599 = vadd.f32 0.0, %v598
  %600 = vmatmul.f32.gmra.mxu0 %v179
  %v601 = vpop.f32.mrf.mxu0
  %v602 = vadd.f32 0.0, %v601
  %603 = vmatmul.f32.gmra.mxu0 %v182
  %v604 = vpop.f32.mrf.mxu0
  %v605 = vadd.f32 0.0, %v604
  %606 = vmatmul.f32.gmra.mxu0 %v185
  %v607 = vpop.f32.mrf.mxu0
  %v608 = vadd.f32 0.0, %v607
  %609 = vmatmul.f32.gmra.mxu0 %v188
  %v610 = vpop.f32.mrf.mxu0
  %v611 = vadd.f32 0.0, %v610
  %612 = vmatmul.f32.gmra.mxu0 %v191
  %v613 = vpop.f32.mrf.mxu0
  %v614 = vadd.f32 0.0, %v613
  %615 = vmatmul.f32.gmra.mxu0 %v194
  %v616 = vpop.f32.mrf.mxu0
  %v617 = vadd.f32 0.0, %v616
  %618 = vmatmul.f32.gmra.mxu0 %v197
  %v619 = vpop.f32.mrf.mxu0
  %v620 = vadd.f32 0.0, %v619
  %621 = vmatmul.f32.gmra.mxu0 %v200
  %v622 = vpop.f32.mrf.mxu0
  %v623 = vadd.f32 0.0, %v622
  %624 = vmatmul.f32.gmra.mxu0 %v203
  %v625 = vpop.f32.mrf.mxu0
  %v626 = vadd.f32 0.0, %v625
  %627 = vmatmul.f32.gmra.mxu0 %v206
  %v628 = vpop.f32.mrf.mxu0
  %v629 = vadd.f32 0.0, %v628
  %630 = vmatmul.f32.gmra.mxu0 %v209
  %v631 = vpop.f32.mrf.mxu0
  %v632 = vadd.f32 0.0, %v631
  %633 = vmatmul.f32.gmra.mxu0 %v212
  %v634 = vpop.f32.mrf.mxu0
  %v635 = vadd.f32 0.0, %v634
  %636 = vmatmul.f32.gmra.mxu0 %v215
  %v637 = vpop.f32.mrf.mxu0
  %v638 = vadd.f32 0.0, %v637
  %639 = vmatmul.f32.gmra.mxu0 %v218
  %v640 = vpop.f32.mrf.mxu0
  %v641 = vadd.f32 0.0, %v640
  %642 = vmatmul.f32.gmra.mxu0 %v221
  %v643 = vpop.f32.mrf.mxu0
  %v644 = vadd.f32 0.0, %v643
  %645 = vmatmul.f32.gmra.mxu0 %v224
  %v646 = vpop.f32.mrf.mxu0
  %v647 = vadd.f32 0.0, %v646
  %648 = vmatmul.f32.gmra.mxu0 %v227
  %v649 = vpop.f32.mrf.mxu0
  %v650 = vadd.f32 0.0, %v649
  %651 = vmatmul.f32.gmra.mxu0 %v230
  %v652 = vpop.f32.mrf.mxu0
  %v653 = vadd.f32 0.0, %v652
  %654 = vmatmul.f32.gmra.mxu0 %v233
  %v655 = vpop.f32.mrf.mxu0
  %v656 = vadd.f32 0.0, %v655
  %657 = vmatmul.f32.gmra.mxu0 %v236
  %v658 = vpop.f32.mrf.mxu0
  %v659 = vadd.f32 0.0, %v658
  %660 = vmatmul.f32.gmra.mxu0 %v239
  %v661 = vpop.f32.mrf.mxu0
  %v662 = vadd.f32 0.0, %v661
  %663 = vmatmul.f32.gmra.mxu0 %v242
  %v664 = vpop.f32.mrf.mxu0
  %v665 = vadd.f32 0.0, %v664
  %666 = vmatmul.f32.gmra.mxu0 %v245
  %v667 = vpop.f32.mrf.mxu0
  %v668 = vadd.f32 0.0, %v667
  %669 = vmatmul.f32.gmra.mxu0 %v248
  %v670 = vpop.f32.mrf.mxu0
  %v671 = vadd.f32 0.0, %v670
  %672 = vmatmul.f32.gmra.mxu0 %v251
  %v673 = vpop.f32.mrf.mxu0
  %v674 = vadd.f32 0.0, %v673
  %675 = vmatmul.f32.gmra.mxu0 %v254
  %v676 = vpop.f32.mrf.mxu0
  %v677 = vadd.f32 0.0, %v676
  %678 = vmatmul.f32.gmra.mxu0 %v257
  %v679 = vpop.f32.mrf.mxu0
  %v680 = vadd.f32 0.0, %v679
  %681 = vmatmul.f32.gmra.mxu0 %v260
  %v682 = vpop.f32.mrf.mxu0
  %v683 = vadd.f32 0.0, %v682
  %684 = vmatmul.f32.gmra.mxu0 %v263
  %v685 = vpop.f32.mrf.mxu0
  %v686 = vadd.f32 0.0, %v685
  %687 = vmatmul.f32.gmra.mxu0 %v266
  %v688 = vpop.f32.mrf.mxu0
  %v689 = vadd.f32 0.0, %v688
  %690 = vmatmul.f32.gmra.mxu0 %v269
  %v691 = vpop.f32.mrf.mxu0
  %v692 = vadd.f32 0.0, %v691
  %693 = vmatmul.f32.gmra.mxu0 %v272
  %v694 = vpop.f32.mrf.mxu0
  %v695 = vadd.f32 0.0, %v694
  %696 = vmatmul.f32.gmra.mxu0 %v275
  %v697 = vpop.f32.mrf.mxu0
  %v698 = vadd.f32 0.0, %v697
  %699 = vmatmul.f32.gmra.mxu0 %v278
  %v700 = vpop.f32.mrf.mxu0
  %v701 = vadd.f32 0.0, %v700
  %702 = vmatmul.f32.gmra.mxu0 %v281
  %v703 = vpop.f32.mrf.mxu0
  %v704 = vadd.f32 0.0, %v703
  %705 = vdwg.mxu0
  %v706 = vld [vmem:[%s2] sm:$0x3]
  %v708 = vperm.slane %v706, 0
  %v709 = vperm.slane %v706, 1
  %v712 = vmul.f32 %v306, %v708
  %v713 = vmul.f32 %v515, %v709
  %v714 = vmul.f32 %v309, %v708
  %v715 = vmul.f32 %v518, %v709
  %v716 = vmul.f32 %v312, %v708
  %v717 = vmul.f32 %v521, %v709
  %v718 = vmul.f32 %v315, %v708
  %v719 = vmul.f32 %v524, %v709
  %v720 = vmul.f32 %v318, %v708
  %v721 = vmul.f32 %v527, %v709
  %v722 = vmul.f32 %v321, %v708
  %v723 = vmul.f32 %v530, %v709
  %v724 = vmul.f32 %v324, %v708
  %v725 = vmul.f32 %v533, %v709
  %v726 = vmul.f32 %v327, %v708
  %v727 = vmul.f32 %v536, %v709
  %v728 = vmul.f32 %v330, %v708
  %v729 = vmul.f32 %v539, %v709
  %v730 = vmul.f32 %v333, %v708
  %v731 = vmul.f32 %v542, %v709
  %v732 = vmul.f32 %v336, %v708
  %v733 = vmul.f32 %v545, %v709
  %v734 = vmul.f32 %v339, %v708
  %v735 = vmul.f32 %v548, %v709
  %v736 = vmul.f32 %v342, %v708
  %v737 = vmul.f32 %v551, %v709
  %v738 = vmul.f32 %v345, %v708
  %v739 = vmul.f32 %v554, %v709
  %v740 = vmul.f32 %v348, %v708
  %v741 = vmul.f32 %v557, %v709
  %v742 = vmul.f32 %v351, %v708
  %v743 = vmul.f32 %v560, %v709
  %v744 = vmul.f32 %v354, %v708
  %v745 = vmul.f32 %v563, %v709
  %v746 = vmul.f32 %v357, %v708
  %v747 = vmul.f32 %v566, %v709
  %v748 = vmul.f32 %v360, %v708
  %v749 = vmul.f32 %v569, %v709
  %v750 = vmul.f32 %v363, %v708
  %v751 = vmul.f32 %v572, %v709
  %v752 = vmul.f32 %v366, %v708
  %v753 = vmul.f32 %v575, %v709
  %v754 = vmul.f32 %v369, %v708
  %v755 = vmul.f32 %v578, %v709
  %v756 = vmul.f32 %v372, %v708
  %v757 = vmul.f32 %v581, %v709
  %v758 = vmul.f32 %v375, %v708
  %v759 = vmul.f32 %v584, %v709
  %v760 = vmul.f32 %v378, %v708
  %v761 = vmul.f32 %v587, %v709
  %v762 = vmul.f32 %v381, %v708
  %v763 = vmul.f32 %v590, %v709
  %v764 = vmul.f32 %v384, %v708
  %v765 = vmul.f32 %v593, %v709
  %v766 = vmul.f32 %v387, %v708
  %v767 = vmul.f32 %v596, %v709
  %v768 = vmul.f32 %v390, %v708
  %v769 = vmul.f32 %v599, %v709
  %v770 = vmul.f32 %v393, %v708
  %v771 = vmul.f32 %v602, %v709
  %v772 = vmul.f32 %v396, %v708
  %v773 = vmul.f32 %v605, %v709
  %v774 = vmul.f32 %v399, %v708
  %v775 = vmul.f32 %v608, %v709
  %v776 = vmul.f32 %v402, %v708
  %v777 = vmul.f32 %v611, %v709
  %v778 = vmul.f32 %v405, %v708
  %v779 = vmul.f32 %v614, %v709
  %v780 = vmul.f32 %v408, %v708
  %v781 = vmul.f32 %v617, %v709
  %v782 = vmul.f32 %v411, %v708
  %v783 = vmul.f32 %v620, %v709
  %v784 = vmul.f32 %v414, %v708
  %v785 = vmul.f32 %v623, %v709
  %v786 = vmul.f32 %v417, %v708
  %v787 = vmul.f32 %v626, %v709
  %v788 = vmul.f32 %v420, %v708
  %v789 = vmul.f32 %v629, %v709
  %v790 = vmul.f32 %v423, %v708
  %v791 = vmul.f32 %v632, %v709
  %v792 = vmul.f32 %v426, %v708
  %v793 = vmul.f32 %v635, %v709
  %v794 = vmul.f32 %v429, %v708
  %v795 = vmul.f32 %v638, %v709
  %v796 = vmul.f32 %v432, %v708
  %v797 = vmul.f32 %v641, %v709
  %v798 = vmul.f32 %v435, %v708
  %v799 = vmul.f32 %v644, %v709
  %v800 = vmul.f32 %v438, %v708
  %v801 = vmul.f32 %v647, %v709
  %v802 = vmul.f32 %v441, %v708
  %v803 = vmul.f32 %v650, %v709
  %v804 = vmul.f32 %v444, %v708
  %v805 = vmul.f32 %v653, %v709
  %v806 = vmul.f32 %v447, %v708
  %v807 = vmul.f32 %v656, %v709
  %v808 = vmul.f32 %v450, %v708
  %v809 = vmul.f32 %v659, %v709
  %v810 = vmul.f32 %v453, %v708
  %v811 = vmul.f32 %v662, %v709
  %v812 = vmul.f32 %v456, %v708
  %v813 = vmul.f32 %v665, %v709
  %v814 = vmul.f32 %v459, %v708
  %v815 = vmul.f32 %v668, %v709
  %v816 = vmul.f32 %v462, %v708
  %v817 = vmul.f32 %v671, %v709
  %v818 = vmul.f32 %v465, %v708
  %v819 = vmul.f32 %v674, %v709
  %v820 = vmul.f32 %v468, %v708
  %v821 = vmul.f32 %v677, %v709
  %v822 = vmul.f32 %v471, %v708
  %v823 = vmul.f32 %v680, %v709
  %v824 = vmul.f32 %v474, %v708
  %v825 = vmul.f32 %v683, %v709
  %v826 = vmul.f32 %v477, %v708
  %v827 = vmul.f32 %v686, %v709
  %v828 = vmul.f32 %v480, %v708
  %v829 = vmul.f32 %v689, %v709
  %v830 = vmul.f32 %v483, %v708
  %v831 = vmul.f32 %v692, %v709
  %v832 = vmul.f32 %v486, %v708
  %v833 = vmul.f32 %v695, %v709
  %v834 = vmul.f32 %v489, %v708
  %v835 = vmul.f32 %v698, %v709
  %v836 = vmul.f32 %v492, %v708
  %v837 = vmul.f32 %v701, %v709
  %v838 = vmul.f32 %v495, %v708
  %v839 = vmul.f32 %v704, %v709
  %v840 = vld [vmem:[%s3] sm:$0x3]
  %v842 = vperm.slane %v840, 0
  %v843 = vperm.slane %v840, 1
  %v846 = vadd.f32 %v712, %v842
  %v847 = vadd.f32 %v713, %v843
  %v848 = vadd.f32 %v714, %v842
  %v849 = vadd.f32 %v715, %v843
  %v850 = vadd.f32 %v716, %v842
  %v851 = vadd.f32 %v717, %v843
  %v852 = vadd.f32 %v718, %v842
  %v853 = vadd.f32 %v719, %v843
  %v854 = vadd.f32 %v720, %v842
  %v855 = vadd.f32 %v721, %v843
  %v856 = vadd.f32 %v722, %v842
  %v857 = vadd.f32 %v723, %v843
  %v858 = vadd.f32 %v724, %v842
  %v859 = vadd.f32 %v725, %v843
  %v860 = vadd.f32 %v726, %v842
  %v861 = vadd.f32 %v727, %v843
  %v862 = vadd.f32 %v728, %v842
  %v863 = vadd.f32 %v729, %v843
  %v864 = vadd.f32 %v730, %v842
  %v865 = vadd.f32 %v731, %v843
  %v866 = vadd.f32 %v732, %v842
  %v867 = vadd.f32 %v733, %v843
  %v868 = vadd.f32 %v734, %v842
  %v869 = vadd.f32 %v735, %v843
  %v870 = vadd.f32 %v736, %v842
  %v871 = vadd.f32 %v737, %v843
  %v872 = vadd.f32 %v738, %v842
  %v873 = vadd.f32 %v739, %v843
  %v874 = vadd.f32 %v740, %v842
  %v875 = vadd.f32 %v741, %v843
  %v876 = vadd.f32 %v742, %v842
  %v877 = vadd.f32 %v743, %v843
  %v878 = vadd.f32 %v744, %v842
  %v879 = vadd.f32 %v745, %v843
  %v880 = vadd.f32 %v746, %v842
  %v881 = vadd.f32 %v747, %v843
  %v882 = vadd.f32 %v748, %v842
  %v883 = vadd.f32 %v749, %v843
  %v884 = vadd.f32 %v750, %v842
  %v885 = vadd.f32 %v751, %v843
  %v886 = vadd.f32 %v752, %v842
  %v887 = vadd.f32 %v753, %v843
  %v888 = vadd.f32 %v754, %v842
  %v889 = vadd.f32 %v755, %v843
  %v890 = vadd.f32 %v756, %v842
  %v891 = vadd.f32 %v757, %v843
  %v892 = vadd.f32 %v758, %v842
  %v893 = vadd.f32 %v759, %v843
  %v894 = vadd.f32 %v760, %v842
  %v895 = vadd.f32 %v761, %v843
  %v896 = vadd.f32 %v762, %v842
  %v897 = vadd.f32 %v763, %v843
  %v898 = vadd.f32 %v764, %v842
  %v899 = vadd.f32 %v765, %v843
  %v900 = vadd.f32 %v766, %v842
  %v901 = vadd.f32 %v767, %v843
  %v902 = vadd.f32 %v768, %v842
  %v903 = vadd.f32 %v769, %v843
  %v904 = vadd.f32 %v770, %v842
  %v905 = vadd.f32 %v771, %v843
  %v906 = vadd.f32 %v772, %v842
  %v907 = vadd.f32 %v773, %v843
  %v908 = vadd.f32 %v774, %v842
  %v909 = vadd.f32 %v775, %v843
  %v910 = vadd.f32 %v776, %v842
  %v911 = vadd.f32 %v777, %v843
  %v912 = vadd.f32 %v778, %v842
  %v913 = vadd.f32 %v779, %v843
  %v914 = vadd.f32 %v780, %v842
  %v915 = vadd.f32 %v781, %v843
  %v916 = vadd.f32 %v782, %v842
  %v917 = vadd.f32 %v783, %v843
  %v918 = vadd.f32 %v784, %v842
  %v919 = vadd.f32 %v785, %v843
  %v920 = vadd.f32 %v786, %v842
  %v921 = vadd.f32 %v787, %v843
  %v922 = vadd.f32 %v788, %v842
  %v923 = vadd.f32 %v789, %v843
  %v924 = vadd.f32 %v790, %v842
  %v925 = vadd.f32 %v791, %v843
  %v926 = vadd.f32 %v792, %v842
  %v927 = vadd.f32 %v793, %v843
  %v928 = vadd.f32 %v794, %v842
  %v929 = vadd.f32 %v795, %v843
  %v930 = vadd.f32 %v796, %v842
  %v931 = vadd.f32 %v797, %v843
  %v932 = vadd.f32 %v798, %v842
  %v933 = vadd.f32 %v799, %v843
  %v934 = vadd.f32 %v800, %v842
  %v935 = vadd.f32 %v801, %v843
  %v936 = vadd.f32 %v802, %v842
  %v937 = vadd.f32 %v803, %v843
  %v938 = vadd.f32 %v804, %v842
  %v939 = vadd.f32 %v805, %v843
  %v940 = vadd.f32 %v806, %v842
  %v941 = vadd.f32 %v807, %v843
  %v942 = vadd.f32 %v808, %v842
  %v943 = vadd.f32 %v809, %v843
  %v944 = vadd.f32 %v810, %v842
  %v945 = vadd.f32 %v811, %v843
  %v946 = vadd.f32 %v812, %v842
  %v947 = vadd.f32 %v813, %v843
  %v948 = vadd.f32 %v814, %v842
  %v949 = vadd.f32 %v815, %v843
  %v950 = vadd.f32 %v816, %v842
  %v951 = vadd.f32 %v817, %v843
  %v952 = vadd.f32 %v818, %v842
  %v953 = vadd.f32 %v819, %v843
  %v954 = vadd.f32 %v820, %v842
  %v955 = vadd.f32 %v821, %v843
  %v956 = vadd.f32 %v822, %v842
  %v957 = vadd.f32 %v823, %v843
  %v958 = vadd.f32 %v824, %v842
  %v959 = vadd.f32 %v825, %v843
  %v960 = vadd.f32 %v826, %v842
  %v961 = vadd.f32 %v827, %v843
  %v962 = vadd.f32 %v828, %v842
  %v963 = vadd.f32 %v829, %v843
  %v964 = vadd.f32 %v830, %v842
  %v965 = vadd.f32 %v831, %v843
  %v966 = vadd.f32 %v832, %v842
  %v967 = vadd.f32 %v833, %v843
  %v968 = vadd.f32 %v834, %v842
  %v969 = vadd.f32 %v835, %v843
  %v970 = vadd.f32 %v836, %v842
  %v971 = vadd.f32 %v837, %v843
  %v972 = vadd.f32 %v838, %v842
  %v973 = vadd.f32 %v839, %v843
  %v974 = vmax.f32 %v846, 0.0
  %v975 = vmax.f32 %v848, 0.0
  %v976 = vmax.f32 %v850, 0.0
  %v977 = vmax.f32 %v852, 0.0
  %v978 = vmax.f32 %v854, 0.0
  %v979 = vmax.f32 %v856, 0.0
  %v980 = vmax.f32 %v858, 0.0
  %v981 = vmax.f32 %v860, 0.0
  %v982 = vmax.f32 %v862, 0.0
  %v983 = vmax.f32 %v864, 0.0
  %v984 = vmax.f32 %v866, 0.0
  %v985 = vmax.f32 %v868, 0.0
  %v986 = vmax.f32 %v870, 0.0
  %v987 = vmax.f32 %v872, 0.0
  %v988 = vmax.f32 %v874, 0.0
  %v989 = vmax.f32 %v876, 0.0
  %v990 = vmax.f32 %v878, 0.0
  %v991 = vmax.f32 %v880, 0.0
  %v992 = vmax.f32 %v882, 0.0
  %v993 = vmax.f32 %v884, 0.0
  %v994 = vmax.f32 %v886, 0.0
  %v995 = vmax.f32 %v888, 0.0
  %v996 = vmax.f32 %v890, 0.0
  %v997 = vmax.f32 %v892, 0.0
  %v998 = vmax.f32 %v894, 0.0
  %v999 = vmax.f32 %v896, 0.0
  %v1000 = vmax.f32 %v898, 0.0
  %v1001 = vmax.f32 %v900, 0.0
  %v1002 = vmax.f32 %v902, 0.0
  %v1003 = vmax.f32 %v904, 0.0
  %v1004 = vmax.f32 %v906, 0.0
  %v1005 = vmax.f32 %v908, 0.0
  %v1006 = vmax.f32 %v910, 0.0
  %v1007 = vmax.f32 %v912, 0.0
  %v1008 = vmax.f32 %v914, 0.0
  %v1009 = vmax.f32 %v916, 0.0
  %v1010 = vmax.f32 %v918, 0.0
  %v1011 = vmax.f32 %v920, 0.0
  %v1012 = vmax.f32 %v922, 0.0
  %v1013 = vmax.f32 %v924, 0.0
  %v1014 = vmax.f32 %v926, 0.0
  %v1015 = vmax.f32 %v928, 0.0
  %v1016 = vmax.f32 %v930, 0.0
  %v1017 = vmax.f32 %v932, 0.0
  %v1018 = vmax.f32 %v934, 0.0
  %v1019 = vmax.f32 %v936, 0.0
  %v1020 = vmax.f32 %v938, 0.0
  %v1021 = vmax.f32 %v940, 0.0
  %v1022 = vmax.f32 %v942, 0.0
  %v1023 = vmax.f32 %v944, 0.0
  %v1024 = vmax.f32 %v946, 0.0
  %v1025 = vmax.f32 %v948, 0.0
  %v1026 = vmax.f32 %v950, 0.0
  %v1027 = vmax.f32 %v952, 0.0
  %v1028 = vmax.f32 %v954, 0.0
  %v1029 = vmax.f32 %v956, 0.0
  %v1030 = vmax.f32 %v958, 0.0
  %v1031 = vmax.f32 %v960, 0.0
  %v1032 = vmax.f32 %v962, 0.0
  %v1033 = vmax.f32 %v964, 0.0
  %v1034 = vmax.f32 %v966, 0.0
  %v1035 = vmax.f32 %v968, 0.0
  %v1036 = vmax.f32 %v970, 0.0
  %v1037 = vmax.f32 %v972, 0.0
  %vm1038 = vcmask 523264
  %1039 = vst.msk [vmem:[%s4] sm:$0xff] %vm1038, %v974
  %1040 = vst.msk [vmem:[%s4 + $0x8] sm:$0xff] %vm1038, %v975
  %1041 = vst.msk [vmem:[%s4 + $0x10] sm:$0xff] %vm1038, %v976
  %1042 = vst.msk [vmem:[%s4 + $0x18] sm:$0xff] %vm1038, %v977
  %1043 = vst.msk [vmem:[%s4 + $0x20] sm:$0xff] %vm1038, %v978
  %1044 = vst.msk [vmem:[%s4 + $0x28] sm:$0xff] %vm1038, %v979
  %1045 = vst.msk [vmem:[%s4 + $0x30] sm:$0xff] %vm1038, %v980
  %1046 = vst.msk [vmem:[%s4 + $0x38] sm:$0xff] %vm1038, %v981
  %1047 = vst.msk [vmem:[%s4 + $0x40] sm:$0xff] %vm1038, %v982
  %1048 = vst.msk [vmem:[%s4 + $0x48] sm:$0xff] %vm1038, %v983
  %1049 = vst.msk [vmem:[%s4 + $0x50] sm:$0xff] %vm1038, %v984
  %1050 = vst.msk [vmem:[%s4 + $0x58] sm:$0xff] %vm1038, %v985
  %1051 = vst.msk [vmem:[%s4 + $0x60] sm:$0xff] %vm1038, %v986
  %1052 = vst.msk [vmem:[%s4 + $0x68] sm:$0xff] %vm1038, %v987
  %1053 = vst.msk [vmem:[%s4 + $0x70] sm:$0xff] %vm1038, %v988
  %1054 = vst.msk [vmem:[%s4 + $0x78] sm:$0xff] %vm1038, %v989
  %1055 = vst.msk [vmem:[%s4 + $0x80] sm:$0xff] %vm1038, %v990
  %1056 = vst.msk [vmem:[%s4 + $0x88] sm:$0xff] %vm1038, %v991
  %1057 = vst.msk [vmem:[%s4 + $0x90] sm:$0xff] %vm1038, %v992
  %1058 = vst.msk [vmem:[%s4 + $0x98] sm:$0xff] %vm1038, %v993
  %1059 = vst.msk [vmem:[%s4 + $0xa0] sm:$0xff] %vm1038, %v994
  %1060 = vst.msk [vmem:[%s4 + $0xa8] sm:$0xff] %vm1038, %v995
  %1061 = vst.msk [vmem:[%s4 + $0xb0] sm:$0xff] %vm1038, %v996
  %1062 = vst.msk [vmem:[%s4 + $0xb8] sm:$0xff] %vm1038, %v997
  %1063 = vst.msk [vmem:[%s4 + $0xc0] sm:$0xff] %vm1038, %v998
  %1064 = vst.msk [vmem:[%s4 + $0xc8] sm:$0xff] %vm1038, %v999
  %1065 = vst.msk [vmem:[%s4 + $0xd0] sm:$0xff] %vm1038, %v1000
  %1066 = vst.msk [vmem:[%s4 + $0xd8] sm:$0xff] %vm1038, %v1001
  %1067 = vst.msk [vmem:[%s4 + $0xe0] sm:$0xff] %vm1038, %v1002
  %1068 = vst.msk [vmem:[%s4 + $0xe8] sm:$0xff] %vm1038, %v1003
  %1069 = vst.msk [vmem:[%s4 + $0xf0] sm:$0xff] %vm1038, %v1004
  %1070 = vst.msk [vmem:[%s4 + $0xf8] sm:$0xff] %vm1038, %v1005
  %1071 = vst.msk [vmem:[%s4 + $0x100] sm:$0xff] %vm1038, %v1006
  %1072 = vst.msk [vmem:[%s4 + $0x108] sm:$0xff] %vm1038, %v1007
  %1073 = vst.msk [vmem:[%s4 + $0x110] sm:$0xff] %vm1038, %v1008
  %1074 = vst.msk [vmem:[%s4 + $0x118] sm:$0xff] %vm1038, %v1009
  %1075 = vst.msk [vmem:[%s4 + $0x120] sm:$0xff] %vm1038, %v1010
  %1076 = vst.msk [vmem:[%s4 + $0x128] sm:$0xff] %vm1038, %v1011
  %1077 = vst.msk [vmem:[%s4 + $0x130] sm:$0xff] %vm1038, %v1012
  %1078 = vst.msk [vmem:[%s4 + $0x138] sm:$0xff] %vm1038, %v1013
  %1079 = vst.msk [vmem:[%s4 + $0x140] sm:$0xff] %vm1038, %v1014
  %1080 = vst.msk [vmem:[%s4 + $0x148] sm:$0xff] %vm1038, %v1015
  %1081 = vst.msk [vmem:[%s4 + $0x150] sm:$0xff] %vm1038, %v1016
  %1082 = vst.msk [vmem:[%s4 + $0x158] sm:$0xff] %vm1038, %v1017
  %1083 = vst.msk [vmem:[%s4 + $0x160] sm:$0xff] %vm1038, %v1018
  %1084 = vst.msk [vmem:[%s4 + $0x168] sm:$0xff] %vm1038, %v1019
  %1085 = vst.msk [vmem:[%s4 + $0x170] sm:$0xff] %vm1038, %v1020
  %1086 = vst.msk [vmem:[%s4 + $0x178] sm:$0xff] %vm1038, %v1021
  %1087 = vst.msk [vmem:[%s4 + $0x180] sm:$0xff] %vm1038, %v1022
  %1088 = vst.msk [vmem:[%s4 + $0x188] sm:$0xff] %vm1038, %v1023
  %1089 = vst.msk [vmem:[%s4 + $0x190] sm:$0xff] %vm1038, %v1024
  %1090 = vst.msk [vmem:[%s4 + $0x198] sm:$0xff] %vm1038, %v1025
  %1091 = vst.msk [vmem:[%s4 + $0x1a0] sm:$0xff] %vm1038, %v1026
  %1092 = vst.msk [vmem:[%s4 + $0x1a8] sm:$0xff] %vm1038, %v1027
  %1093 = vst.msk [vmem:[%s4 + $0x1b0] sm:$0xff] %vm1038, %v1028
  %1094 = vst.msk [vmem:[%s4 + $0x1b8] sm:$0xff] %vm1038, %v1029
  %1095 = vst.msk [vmem:[%s4 + $0x1c0] sm:$0xff] %vm1038, %v1030
  %1096 = vst.msk [vmem:[%s4 + $0x1c8] sm:$0xff] %vm1038, %v1031
  %1097 = vst.msk [vmem:[%s4 + $0x1d0] sm:$0xff] %vm1038, %v1032
  %1098 = vst.msk [vmem:[%s4 + $0x1d8] sm:$0xff] %vm1038, %v1033
  %1099 = vst.msk [vmem:[%s4 + $0x1e0] sm:$0xff] %vm1038, %v1034
  %1100 = vst.msk [vmem:[%s4 + $0x1e8] sm:$0xff] %vm1038, %v1035
  %1101 = vst.msk [vmem:[%s4 + $0x1f0] sm:$0xff] %vm1038, %v1036
  %1102 = vst.msk [vmem:[%s4 + $0x1f8] sm:$0xff] %vm1038, %v1037
  %1167 = vrot.lane.b32.xlu0 %v974, 64
  %v1168 = vpop.permute.xlu0 %1167
  %1169 = vrot.lane.b32.xlu0 %v975, 64
  %v1170 = vpop.permute.xlu0 %1169
  %1171 = vrot.lane.b32.xlu0 %v976, 64
  %v1172 = vpop.permute.xlu0 %1171
  %1173 = vrot.lane.b32.xlu0 %v977, 64
  %v1174 = vpop.permute.xlu0 %1173
  %1175 = vrot.lane.b32.xlu0 %v978, 64
  %v1176 = vpop.permute.xlu0 %1175
  %1177 = vrot.lane.b32.xlu0 %v979, 64
  %v1178 = vpop.permute.xlu0 %1177
  %1179 = vrot.lane.b32.xlu0 %v980, 64
  %v1180 = vpop.permute.xlu0 %1179
  %1181 = vrot.lane.b32.xlu0 %v981, 64
  %v1182 = vpop.permute.xlu0 %1181
  %1183 = vrot.lane.b32.xlu0 %v982, 64
  %v1184 = vpop.permute.xlu0 %1183
  %1185 = vrot.lane.b32.xlu0 %v983, 64
  %v1186 = vpop.permute.xlu0 %1185
  %1187 = vrot.lane.b32.xlu0 %v984, 64
  %v1188 = vpop.permute.xlu0 %1187
  %1189 = vrot.lane.b32.xlu0 %v985, 64
  %v1190 = vpop.permute.xlu0 %1189
  %1191 = vrot.lane.b32.xlu0 %v986, 64
  %v1192 = vpop.permute.xlu0 %1191
  %1193 = vrot.lane.b32.xlu0 %v987, 64
  %v1194 = vpop.permute.xlu0 %1193
  %1195 = vrot.lane.b32.xlu0 %v988, 64
  %v1196 = vpop.permute.xlu0 %1195
  %1197 = vrot.lane.b32.xlu0 %v989, 64
  %v1198 = vpop.permute.xlu0 %1197
  %1199 = vrot.lane.b32.xlu0 %v990, 64
  %v1200 = vpop.permute.xlu0 %1199
  %1201 = vrot.lane.b32.xlu0 %v991, 64
  %v1202 = vpop.permute.xlu0 %1201
  %1203 = vrot.lane.b32.xlu0 %v992, 64
  %v1204 = vpop.permute.xlu0 %1203
  %1205 = vrot.lane.b32.xlu0 %v993, 64
  %v1206 = vpop.permute.xlu0 %1205
  %1207 = vrot.lane.b32.xlu0 %v994, 64
  %v1208 = vpop.permute.xlu0 %1207
  %1209 = vrot.lane.b32.xlu0 %v995, 64
  %v1210 = vpop.permute.xlu0 %1209
  %1211 = vrot.lane.b32.xlu0 %v996, 64
  %v1212 = vpop.permute.xlu0 %1211
  %1213 = vrot.lane.b32.xlu0 %v997, 64
  %v1214 = vpop.permute.xlu0 %1213
  %1215 = vrot.lane.b32.xlu0 %v998, 64
  %v1216 = vpop.permute.xlu0 %1215
  %1217 = vrot.lane.b32.xlu0 %v999, 64
  %v1218 = vpop.permute.xlu0 %1217
  %1219 = vrot.lane.b32.xlu0 %v1000, 64
  %v1220 = vpop.permute.xlu0 %1219
  %1221 = vrot.lane.b32.xlu0 %v1001, 64
  %v1222 = vpop.permute.xlu0 %1221
  %1223 = vrot.lane.b32.xlu0 %v1002, 64
  %v1224 = vpop.permute.xlu0 %1223
  %1225 = vrot.lane.b32.xlu0 %v1003, 64
  %v1226 = vpop.permute.xlu0 %1225
  %1227 = vrot.lane.b32.xlu0 %v1004, 64
  %v1228 = vpop.permute.xlu0 %1227
  %1229 = vrot.lane.b32.xlu0 %v1005, 64
  %v1230 = vpop.permute.xlu0 %1229
  %1231 = vrot.lane.b32.xlu0 %v1006, 64
  %v1232 = vpop.permute.xlu0 %1231
  %1233 = vrot.lane.b32.xlu0 %v1007, 64
  %v1234 = vpop.permute.xlu0 %1233
  %1235 = vrot.lane.b32.xlu0 %v1008, 64
  %v1236 = vpop.permute.xlu0 %1235
  %1237 = vrot.lane.b32.xlu0 %v1009, 64
  %v1238 = vpop.permute.xlu0 %1237
  %1239 = vrot.lane.b32.xlu0 %v1010, 64
  %v1240 = vpop.permute.xlu0 %1239
  %1241 = vrot.lane.b32.xlu0 %v1011, 64
  %v1242 = vpop.permute.xlu0 %1241
  %1243 = vrot.lane.b32.xlu0 %v1012, 64
  %v1244 = vpop.permute.xlu0 %1243
  %1245 = vrot.lane.b32.xlu0 %v1013, 64
  %v1246 = vpop.permute.xlu0 %1245
  %1247 = vrot.lane.b32.xlu0 %v1014, 64
  %v1248 = vpop.permute.xlu0 %1247
  %1249 = vrot.lane.b32.xlu0 %v1015, 64
  %v1250 = vpop.permute.xlu0 %1249
  %1251 = vrot.lane.b32.xlu0 %v1016, 64
  %v1252 = vpop.permute.xlu0 %1251
  %1253 = vrot.lane.b32.xlu0 %v1017, 64
  %v1254 = vpop.permute.xlu0 %1253
  %1255 = vrot.lane.b32.xlu0 %v1018, 64
  %v1256 = vpop.permute.xlu0 %1255
  %1257 = vrot.lane.b32.xlu0 %v1019, 64
  %v1258 = vpop.permute.xlu0 %1257
  %1259 = vrot.lane.b32.xlu0 %v1020, 64
  %v1260 = vpop.permute.xlu0 %1259
  %1261 = vrot.lane.b32.xlu0 %v1021, 64
  %v1262 = vpop.permute.xlu0 %1261
  %1263 = vrot.lane.b32.xlu0 %v1022, 64
  %v1264 = vpop.permute.xlu0 %1263
  %1265 = vrot.lane.b32.xlu0 %v1023, 64
  %v1266 = vpop.permute.xlu0 %1265
  %1267 = vrot.lane.b32.xlu0 %v1024, 64
  %v1268 = vpop.permute.xlu0 %1267
  %1269 = vrot.lane.b32.xlu0 %v1025, 64
  %v1270 = vpop.permute.xlu0 %1269
  %1271 = vrot.lane.b32.xlu0 %v1026, 64
  %v1272 = vpop.permute.xlu0 %1271
  %1273 = vrot.lane.b32.xlu0 %v1027, 64
  %v1274 = vpop.permute.xlu0 %1273
  %1275 = vrot.lane.b32.xlu0 %v1028, 64
  %v1276 = vpop.permute.xlu0 %1275
  %1277 = vrot.lane.b32.xlu0 %v1029, 64
  %v1278 = vpop.permute.xlu0 %1277
  %1279 = vrot.lane.b32.xlu0 %v1030, 64
  %v1280 = vpop.permute.xlu0 %1279
  %1281 = vrot.lane.b32.xlu0 %v1031, 64
  %v1282 = vpop.permute.xlu0 %1281
  %1283 = vrot.lane.b32.xlu0 %v1032, 64
  %v1284 = vpop.permute.xlu0 %1283
  %1285 = vrot.lane.b32.xlu0 %v1033, 64
  %v1286 = vpop.permute.xlu0 %1285
  %1287 = vrot.lane.b32.xlu0 %v1034, 64
  %v1288 = vpop.permute.xlu0 %1287
  %1289 = vrot.lane.b32.xlu0 %v1035, 64
  %v1290 = vpop.permute.xlu0 %1289
  %1291 = vrot.lane.b32.xlu0 %v1036, 64
  %v1292 = vpop.permute.xlu0 %1291
  %1293 = vrot.lane.b32.xlu0 %v1037, 64
  %v1294 = vpop.permute.xlu0 %1293
  %vm1359 = vcmask 392192
  %1360 = vst.msk [vmem:[%s5] sm:$0xff] %vm1359, %v1168
  %1361 = vst.msk [vmem:[%s5 + $0x8] sm:$0xff] %vm1359, %v1170
  %1362 = vst.msk [vmem:[%s5 + $0x10] sm:$0xff] %vm1359, %v1172
  %1363 = vst.msk [vmem:[%s5 + $0x18] sm:$0xff] %vm1359, %v1174
  %1364 = vst.msk [vmem:[%s5 + $0x20] sm:$0xff] %vm1359, %v1176
  %1365 = vst.msk [vmem:[%s5 + $0x28] sm:$0xff] %vm1359, %v1178
  %1366 = vst.msk [vmem:[%s5 + $0x30] sm:$0xff] %vm1359, %v1180
  %1367 = vst.msk [vmem:[%s5 + $0x38] sm:$0xff] %vm1359, %v1182
  %1368 = vst.msk [vmem:[%s5 + $0x40] sm:$0xff] %vm1359, %v1184
  %1369 = vst.msk [vmem:[%s5 + $0x48] sm:$0xff] %vm1359, %v1186
  %1370 = vst.msk [vmem:[%s5 + $0x50] sm:$0xff] %vm1359, %v1188
  %1371 = vst.msk [vmem:[%s5 + $0x58] sm:$0xff] %vm1359, %v1190
  %1372 = vst.msk [vmem:[%s5 + $0x60] sm:$0xff] %vm1359, %v1192
  %1373 = vst.msk [vmem:[%s5 + $0x68] sm:$0xff] %vm1359, %v1194
  %1374 = vst.msk [vmem:[%s5 + $0x70] sm:$0xff] %vm1359, %v1196
  %1375 = vst.msk [vmem:[%s5 + $0x78] sm:$0xff] %vm1359, %v1198
  %1376 = vst.msk [vmem:[%s5 + $0x80] sm:$0xff] %vm1359, %v1200
  %1377 = vst.msk [vmem:[%s5 + $0x88] sm:$0xff] %vm1359, %v1202
  %1378 = vst.msk [vmem:[%s5 + $0x90] sm:$0xff] %vm1359, %v1204
  %1379 = vst.msk [vmem:[%s5 + $0x98] sm:$0xff] %vm1359, %v1206
  %1380 = vst.msk [vmem:[%s5 + $0xa0] sm:$0xff] %vm1359, %v1208
  %1381 = vst.msk [vmem:[%s5 + $0xa8] sm:$0xff] %vm1359, %v1210
  %1382 = vst.msk [vmem:[%s5 + $0xb0] sm:$0xff] %vm1359, %v1212
  %1383 = vst.msk [vmem:[%s5 + $0xb8] sm:$0xff] %vm1359, %v1214
  %1384 = vst.msk [vmem:[%s5 + $0xc0] sm:$0xff] %vm1359, %v1216
  %1385 = vst.msk [vmem:[%s5 + $0xc8] sm:$0xff] %vm1359, %v1218
  %1386 = vst.msk [vmem:[%s5 + $0xd0] sm:$0xff] %vm1359, %v1220
  %1387 = vst.msk [vmem:[%s5 + $0xd8] sm:$0xff] %vm1359, %v1222
  %1388 = vst.msk [vmem:[%s5 + $0xe0] sm:$0xff] %vm1359, %v1224
  %1389 = vst.msk [vmem:[%s5 + $0xe8] sm:$0xff] %vm1359, %v1226
  %1390 = vst.msk [vmem:[%s5 + $0xf0] sm:$0xff] %vm1359, %v1228
  %1391 = vst.msk [vmem:[%s5 + $0xf8] sm:$0xff] %vm1359, %v1230
  %1392 = vst.msk [vmem:[%s5 + $0x100] sm:$0xff] %vm1359, %v1232
  %1393 = vst.msk [vmem:[%s5 + $0x108] sm:$0xff] %vm1359, %v1234
  %1394 = vst.msk [vmem:[%s5 + $0x110] sm:$0xff] %vm1359, %v1236
  %1395 = vst.msk [vmem:[%s5 + $0x118] sm:$0xff] %vm1359, %v1238
  %1396 = vst.msk [vmem:[%s5 + $0x120] sm:$0xff] %vm1359, %v1240
  %1397 = vst.msk [vmem:[%s5 + $0x128] sm:$0xff] %vm1359, %v1242
  %1398 = vst.msk [vmem:[%s5 + $0x130] sm:$0xff] %vm1359, %v1244
  %1399 = vst.msk [vmem:[%s5 + $0x138] sm:$0xff] %vm1359, %v1246
  %1400 = vst.msk [vmem:[%s5 + $0x140] sm:$0xff] %vm1359, %v1248
  %1401 = vst.msk [vmem:[%s5 + $0x148] sm:$0xff] %vm1359, %v1250
  %1402 = vst.msk [vmem:[%s5 + $0x150] sm:$0xff] %vm1359, %v1252
  %1403 = vst.msk [vmem:[%s5 + $0x158] sm:$0xff] %vm1359, %v1254
  %1404 = vst.msk [vmem:[%s5 + $0x160] sm:$0xff] %vm1359, %v1256
  %1405 = vst.msk [vmem:[%s5 + $0x168] sm:$0xff] %vm1359, %v1258
  %1406 = vst.msk [vmem:[%s5 + $0x170] sm:$0xff] %vm1359, %v1260
  %1407 = vst.msk [vmem:[%s5 + $0x178] sm:$0xff] %vm1359, %v1262
  %1408 = vst.msk [vmem:[%s5 + $0x180] sm:$0xff] %vm1359, %v1264
  %1409 = vst.msk [vmem:[%s5 + $0x188] sm:$0xff] %vm1359, %v1266
  %1410 = vst.msk [vmem:[%s5 + $0x190] sm:$0xff] %vm1359, %v1268
  %1411 = vst.msk [vmem:[%s5 + $0x198] sm:$0xff] %vm1359, %v1270
  %1412 = vst.msk [vmem:[%s5 + $0x1a0] sm:$0xff] %vm1359, %v1272
  %1413 = vst.msk [vmem:[%s5 + $0x1a8] sm:$0xff] %vm1359, %v1274
  %1414 = vst.msk [vmem:[%s5 + $0x1b0] sm:$0xff] %vm1359, %v1276
  %1415 = vst.msk [vmem:[%s5 + $0x1b8] sm:$0xff] %vm1359, %v1278
  %1416 = vst.msk [vmem:[%s5 + $0x1c0] sm:$0xff] %vm1359, %v1280
  %1417 = vst.msk [vmem:[%s5 + $0x1c8] sm:$0xff] %vm1359, %v1282
  %1418 = vst.msk [vmem:[%s5 + $0x1d0] sm:$0xff] %vm1359, %v1284
  %1419 = vst.msk [vmem:[%s5 + $0x1d8] sm:$0xff] %vm1359, %v1286
  %1420 = vst.msk [vmem:[%s5 + $0x1e0] sm:$0xff] %vm1359, %v1288
  %1421 = vst.msk [vmem:[%s5 + $0x1e8] sm:$0xff] %vm1359, %v1290
  %1422 = vst.msk [vmem:[%s5 + $0x1f0] sm:$0xff] %vm1359, %v1292
  %1423 = vst.msk [vmem:[%s5 + $0x1f8] sm:$0xff] %vm1359, %v1294
  %v1424 = vmax.f32 %v847, 0.0
  %v1425 = vmax.f32 %v849, 0.0
  %v1426 = vmax.f32 %v851, 0.0
  %v1427 = vmax.f32 %v853, 0.0
  %v1428 = vmax.f32 %v855, 0.0
  %v1429 = vmax.f32 %v857, 0.0
  %v1430 = vmax.f32 %v859, 0.0
  %v1431 = vmax.f32 %v861, 0.0
  %v1432 = vmax.f32 %v863, 0.0
  %v1433 = vmax.f32 %v865, 0.0
  %v1434 = vmax.f32 %v867, 0.0
  %v1435 = vmax.f32 %v869, 0.0
  %v1436 = vmax.f32 %v871, 0.0
  %v1437 = vmax.f32 %v873, 0.0
  %v1438 = vmax.f32 %v875, 0.0
  %v1439 = vmax.f32 %v877, 0.0
  %v1440 = vmax.f32 %v879, 0.0
  %v1441 = vmax.f32 %v881, 0.0
  %v1442 = vmax.f32 %v883, 0.0
  %v1443 = vmax.f32 %v885, 0.0
  %v1444 = vmax.f32 %v887, 0.0
  %v1445 = vmax.f32 %v889, 0.0
  %v1446 = vmax.f32 %v891, 0.0
  %v1447 = vmax.f32 %v893, 0.0
  %v1448 = vmax.f32 %v895, 0.0
  %v1449 = vmax.f32 %v897, 0.0
  %v1450 = vmax.f32 %v899, 0.0
  %v1451 = vmax.f32 %v901, 0.0
  %v1452 = vmax.f32 %v903, 0.0
  %v1453 = vmax.f32 %v905, 0.0
  %v1454 = vmax.f32 %v907, 0.0
  %v1455 = vmax.f32 %v909, 0.0
  %v1456 = vmax.f32 %v911, 0.0
  %v1457 = vmax.f32 %v913, 0.0
  %v1458 = vmax.f32 %v915, 0.0
  %v1459 = vmax.f32 %v917, 0.0
  %v1460 = vmax.f32 %v919, 0.0
  %v1461 = vmax.f32 %v921, 0.0
  %v1462 = vmax.f32 %v923, 0.0
  %v1463 = vmax.f32 %v925, 0.0
  %v1464 = vmax.f32 %v927, 0.0
  %v1465 = vmax.f32 %v929, 0.0
  %v1466 = vmax.f32 %v931, 0.0
  %v1467 = vmax.f32 %v933, 0.0
  %v1468 = vmax.f32 %v935, 0.0
  %v1469 = vmax.f32 %v937, 0.0
  %v1470 = vmax.f32 %v939, 0.0
  %v1471 = vmax.f32 %v941, 0.0
  %v1472 = vmax.f32 %v943, 0.0
  %v1473 = vmax.f32 %v945, 0.0
  %v1474 = vmax.f32 %v947, 0.0
  %v1475 = vmax.f32 %v949, 0.0
  %v1476 = vmax.f32 %v951, 0.0
  %v1477 = vmax.f32 %v953, 0.0
  %v1478 = vmax.f32 %v955, 0.0
  %v1479 = vmax.f32 %v957, 0.0
  %v1480 = vmax.f32 %v959, 0.0
  %v1481 = vmax.f32 %v961, 0.0
  %v1482 = vmax.f32 %v963, 0.0
  %v1483 = vmax.f32 %v965, 0.0
  %v1484 = vmax.f32 %v967, 0.0
  %v1485 = vmax.f32 %v969, 0.0
  %v1486 = vmax.f32 %v971, 0.0
  %v1487 = vmax.f32 %v973, 0.0
  %1552 = vrot.lane.b32.xlu0 %v974, 16
  %v1553 = vpop.permute.xlu0 %1552
  %1554 = vrot.lane.b32.xlu0 %v1424, 16
  %v1555 = vpop.permute.xlu0 %1554
  %1556 = vrot.lane.b32.xlu0 %v975, 16
  %v1557 = vpop.permute.xlu0 %1556
  %1558 = vrot.lane.b32.xlu0 %v1425, 16
  %v1559 = vpop.permute.xlu0 %1558
  %1560 = vrot.lane.b32.xlu0 %v976, 16
  %v1561 = vpop.permute.xlu0 %1560
  %1562 = vrot.lane.b32.xlu0 %v1426, 16
  %v1563 = vpop.permute.xlu0 %1562
  %1564 = vrot.lane.b32.xlu0 %v977, 16
  %v1565 = vpop.permute.xlu0 %1564
  %1566 = vrot.lane.b32.xlu0 %v1427, 16
  %v1567 = vpop.permute.xlu0 %1566
  %1568 = vrot.lane.b32.xlu0 %v978, 16
  %v1569 = vpop.permute.xlu0 %1568
  %1570 = vrot.lane.b32.xlu0 %v1428, 16
  %v1571 = vpop.permute.xlu0 %1570
  %1572 = vrot.lane.b32.xlu0 %v979, 16
  %v1573 = vpop.permute.xlu0 %1572
  %1574 = vrot.lane.b32.xlu0 %v1429, 16
  %v1575 = vpop.permute.xlu0 %1574
  %1576 = vrot.lane.b32.xlu0 %v980, 16
  %v1577 = vpop.permute.xlu0 %1576
  %1578 = vrot.lane.b32.xlu0 %v1430, 16
  %v1579 = vpop.permute.xlu0 %1578
  %1580 = vrot.lane.b32.xlu0 %v981, 16
  %v1581 = vpop.permute.xlu0 %1580
  %1582 = vrot.lane.b32.xlu0 %v1431, 16
  %v1583 = vpop.permute.xlu0 %1582
  %1584 = vrot.lane.b32.xlu0 %v982, 16
  %v1585 = vpop.permute.xlu0 %1584
  %1586 = vrot.lane.b32.xlu0 %v1432, 16
  %v1587 = vpop.permute.xlu0 %1586
  %1588 = vrot.lane.b32.xlu0 %v983, 16
  %v1589 = vpop.permute.xlu0 %1588
  %1590 = vrot.lane.b32.xlu0 %v1433, 16
  %v1591 = vpop.permute.xlu0 %1590
  %1592 = vrot.lane.b32.xlu0 %v984, 16
  %v1593 = vpop.permute.xlu0 %1592
  %1594 = vrot.lane.b32.xlu0 %v1434, 16
  %v1595 = vpop.permute.xlu0 %1594
  %1596 = vrot.lane.b32.xlu0 %v985, 16
  %v1597 = vpop.permute.xlu0 %1596
  %1598 = vrot.lane.b32.xlu0 %v1435, 16
  %v1599 = vpop.permute.xlu0 %1598
  %1600 = vrot.lane.b32.xlu0 %v986, 16
  %v1601 = vpop.permute.xlu0 %1600
  %1602 = vrot.lane.b32.xlu0 %v1436, 16
  %v1603 = vpop.permute.xlu0 %1602
  %1604 = vrot.lane.b32.xlu0 %v987, 16
  %v1605 = vpop.permute.xlu0 %1604
  %1606 = vrot.lane.b32.xlu0 %v1437, 16
  %v1607 = vpop.permute.xlu0 %1606
  %1608 = vrot.lane.b32.xlu0 %v988, 16
  %v1609 = vpop.permute.xlu0 %1608
  %1610 = vrot.lane.b32.xlu0 %v1438, 16
  %v1611 = vpop.permute.xlu0 %1610
  %1612 = vrot.lane.b32.xlu0 %v989, 16
  %v1613 = vpop.permute.xlu0 %1612
  %1614 = vrot.lane.b32.xlu0 %v1439, 16
  %v1615 = vpop.permute.xlu0 %1614
  %1616 = vrot.lane.b32.xlu0 %v990, 16
  %v1617 = vpop.permute.xlu0 %1616
  %1618 = vrot.lane.b32.xlu0 %v1440, 16
  %v1619 = vpop.permute.xlu0 %1618
  %1620 = vrot.lane.b32.xlu0 %v991, 16
  %v1621 = vpop.permute.xlu0 %1620
  %1622 = vrot.lane.b32.xlu0 %v1441, 16
  %v1623 = vpop.permute.xlu0 %1622
  %1624 = vrot.lane.b32.xlu0 %v992, 16
  %v1625 = vpop.permute.xlu0 %1624
  %1626 = vrot.lane.b32.xlu0 %v1442, 16
  %v1627 = vpop.permute.xlu0 %1626
  %1628 = vrot.lane.b32.xlu0 %v993, 16
  %v1629 = vpop.permute.xlu0 %1628
  %1630 = vrot.lane.b32.xlu0 %v1443, 16
  %v1631 = vpop.permute.xlu0 %1630
  %1632 = vrot.lane.b32.xlu0 %v994, 16
  %v1633 = vpop.permute.xlu0 %1632
  %1634 = vrot.lane.b32.xlu0 %v1444, 16
  %v1635 = vpop.permute.xlu0 %1634
  %1636 = vrot.lane.b32.xlu0 %v995, 16
  %v1637 = vpop.permute.xlu0 %1636
  %1638 = vrot.lane.b32.xlu0 %v1445, 16
  %v1639 = vpop.permute.xlu0 %1638
  %1640 = vrot.lane.b32.xlu0 %v996, 16
  %v1641 = vpop.permute.xlu0 %1640
  %1642 = vrot.lane.b32.xlu0 %v1446, 16
  %v1643 = vpop.permute.xlu0 %1642
  %1644 = vrot.lane.b32.xlu0 %v997, 16
  %v1645 = vpop.permute.xlu0 %1644
  %1646 = vrot.lane.b32.xlu0 %v1447, 16
  %v1647 = vpop.permute.xlu0 %1646
  %1648 = vrot.lane.b32.xlu0 %v998, 16
  %v1649 = vpop.permute.xlu0 %1648
  %1650 = vrot.lane.b32.xlu0 %v1448, 16
  %v1651 = vpop.permute.xlu0 %1650
  %1652 = vrot.lane.b32.xlu0 %v999, 16
  %v1653 = vpop.permute.xlu0 %1652
  %1654 = vrot.lane.b32.xlu0 %v1449, 16
  %v1655 = vpop.permute.xlu0 %1654
  %1656 = vrot.lane.b32.xlu0 %v1000, 16
  %v1657 = vpop.permute.xlu0 %1656
  %1658 = vrot.lane.b32.xlu0 %v1450, 16
  %v1659 = vpop.permute.xlu0 %1658
  %1660 = vrot.lane.b32.xlu0 %v1001, 16
  %v1661 = vpop.permute.xlu0 %1660
  %1662 = vrot.lane.b32.xlu0 %v1451, 16
  %v1663 = vpop.permute.xlu0 %1662
  %1664 = vrot.lane.b32.xlu0 %v1002, 16
  %v1665 = vpop.permute.xlu0 %1664
  %1666 = vrot.lane.b32.xlu0 %v1452, 16
  %v1667 = vpop.permute.xlu0 %1666
  %1668 = vrot.lane.b32.xlu0 %v1003, 16
  %v1669 = vpop.permute.xlu0 %1668
  %1670 = vrot.lane.b32.xlu0 %v1453, 16
  %v1671 = vpop.permute.xlu0 %1670
  %1672 = vrot.lane.b32.xlu0 %v1004, 16
  %v1673 = vpop.permute.xlu0 %1672
  %1674 = vrot.lane.b32.xlu0 %v1454, 16
  %v1675 = vpop.permute.xlu0 %1674
  %1676 = vrot.lane.b32.xlu0 %v1005, 16
  %v1677 = vpop.permute.xlu0 %1676
  %1678 = vrot.lane.b32.xlu0 %v1455, 16
  %v1679 = vpop.permute.xlu0 %1678
  %1680 = vrot.lane.b32.xlu0 %v1006, 16
  %v1681 = vpop.permute.xlu0 %1680
  %1682 = vrot.lane.b32.xlu0 %v1456, 16
  %v1683 = vpop.permute.xlu0 %1682
  %1684 = vrot.lane.b32.xlu0 %v1007, 16
  %v1685 = vpop.permute.xlu0 %1684
  %1686 = vrot.lane.b32.xlu0 %v1457, 16
  %v1687 = vpop.permute.xlu0 %1686
  %1688 = vrot.lane.b32.xlu0 %v1008, 16
  %v1689 = vpop.permute.xlu0 %1688
  %1690 = vrot.lane.b32.xlu0 %v1458, 16
  %v1691 = vpop.permute.xlu0 %1690
  %1692 = vrot.lane.b32.xlu0 %v1009, 16
  %v1693 = vpop.permute.xlu0 %1692
  %1694 = vrot.lane.b32.xlu0 %v1459, 16
  %v1695 = vpop.permute.xlu0 %1694
  %1696 = vrot.lane.b32.xlu0 %v1010, 16
  %v1697 = vpop.permute.xlu0 %1696
  %1698 = vrot.lane.b32.xlu0 %v1460, 16
  %v1699 = vpop.permute.xlu0 %1698
  %1700 = vrot.lane.b32.xlu0 %v1011, 16
  %v1701 = vpop.permute.xlu0 %1700
  %1702 = vrot.lane.b32.xlu0 %v1461, 16
  %v1703 = vpop.permute.xlu0 %1702
  %1704 = vrot.lane.b32.xlu0 %v1012, 16
  %v1705 = vpop.permute.xlu0 %1704
  %1706 = vrot.lane.b32.xlu0 %v1462, 16
  %v1707 = vpop.permute.xlu0 %1706
  %1708 = vrot.lane.b32.xlu0 %v1013, 16
  %v1709 = vpop.permute.xlu0 %1708
  %1710 = vrot.lane.b32.xlu0 %v1463, 16
  %v1711 = vpop.permute.xlu0 %1710
  %1712 = vrot.lane.b32.xlu0 %v1014, 16
  %v1713 = vpop.permute.xlu0 %1712
  %1714 = vrot.lane.b32.xlu0 %v1464, 16
  %v1715 = vpop.permute.xlu0 %1714
  %1716 = vrot.lane.b32.xlu0 %v1015, 16
  %v1717 = vpop.permute.xlu0 %1716
  %1718 = vrot.lane.b32.xlu0 %v1465, 16
  %v1719 = vpop.permute.xlu0 %1718
  %1720 = vrot.lane.b32.xlu0 %v1016, 16
  %v1721 = vpop.permute.xlu0 %1720
  %1722 = vrot.lane.b32.xlu0 %v1466, 16
  %v1723 = vpop.permute.xlu0 %1722
  %1724 = vrot.lane.b32.xlu0 %v1017, 16
  %v1725 = vpop.permute.xlu0 %1724
  %1726 = vrot.lane.b32.xlu0 %v1467, 16
  %v1727 = vpop.permute.xlu0 %1726
  %1728 = vrot.lane.b32.xlu0 %v1018, 16
  %v1729 = vpop.permute.xlu0 %1728
  %1730 = vrot.lane.b32.xlu0 %v1468, 16
  %v1731 = vpop.permute.xlu0 %1730
  %1732 = vrot.lane.b32.xlu0 %v1019, 16
  %v1733 = vpop.permute.xlu0 %1732
  %1734 = vrot.lane.b32.xlu0 %v1469, 16
  %v1735 = vpop.permute.xlu0 %1734
  %1736 = vrot.lane.b32.xlu0 %v1020, 16
  %v1737 = vpop.permute.xlu0 %1736
  %1738 = vrot.lane.b32.xlu0 %v1470, 16
  %v1739 = vpop.permute.xlu0 %1738
  %1740 = vrot.lane.b32.xlu0 %v1021, 16
  %v1741 = vpop.permute.xlu0 %1740
  %1742 = vrot.lane.b32.xlu0 %v1471, 16
  %v1743 = vpop.permute.xlu0 %1742
  %1744 = vrot.lane.b32.xlu0 %v1022, 16
  %v1745 = vpop.permute.xlu0 %1744
  %1746 = vrot.lane.b32.xlu0 %v1472, 16
  %v1747 = vpop.permute.xlu0 %1746
  %1748 = vrot.lane.b32.xlu0 %v1023, 16
  %v1749 = vpop.permute.xlu0 %1748
  %1750 = vrot.lane.b32.xlu0 %v1473, 16
  %v1751 = vpop.permute.xlu0 %1750
  %1752 = vrot.lane.b32.xlu0 %v1024, 16
  %v1753 = vpop.permute.xlu0 %1752
  %1754 = vrot.lane.b32.xlu0 %v1474, 16
  %v1755 = vpop.permute.xlu0 %1754
  %1756 = vrot.lane.b32.xlu0 %v1025, 16
  %v1757 = vpop.permute.xlu0 %1756
  %1758 = vrot.lane.b32.xlu0 %v1475, 16
  %v1759 = vpop.permute.xlu0 %1758
  %1760 = vrot.lane.b32.xlu0 %v1026, 16
  %v1761 = vpop.permute.xlu0 %1760
  %1762 = vrot.lane.b32.xlu0 %v1476, 16
  %v1763 = vpop.permute.xlu0 %1762
  %1764 = vrot.lane.b32.xlu0 %v1027, 16
  %v1765 = vpop.permute.xlu0 %1764
  %1766 = vrot.lane.b32.xlu0 %v1477, 16
  %v1767 = vpop.permute.xlu0 %1766
  %1768 = vrot.lane.b32.xlu0 %v1028, 16
  %v1769 = vpop.permute.xlu0 %1768
  %1770 = vrot.lane.b32.xlu0 %v1478, 16
  %v1771 = vpop.permute.xlu0 %1770
  %1772 = vrot.lane.b32.xlu0 %v1029, 16
  %v1773 = vpop.permute.xlu0 %1772
  %1774 = vrot.lane.b32.xlu0 %v1479, 16
  %v1775 = vpop.permute.xlu0 %1774
  %1776 = vrot.lane.b32.xlu0 %v1030, 16
  %v1777 = vpop.permute.xlu0 %1776
  %1778 = vrot.lane.b32.xlu0 %v1480, 16
  %v1779 = vpop.permute.xlu0 %1778
  %1780 = vrot.lane.b32.xlu0 %v1031, 16
  %v1781 = vpop.permute.xlu0 %1780
  %1782 = vrot.lane.b32.xlu0 %v1481, 16
  %v1783 = vpop.permute.xlu0 %1782
  %1784 = vrot.lane.b32.xlu0 %v1032, 16
  %v1785 = vpop.permute.xlu0 %1784
  %1786 = vrot.lane.b32.xlu0 %v1482, 16
  %v1787 = vpop.permute.xlu0 %1786
  %1788 = vrot.lane.b32.xlu0 %v1033, 16
  %v1789 = vpop.permute.xlu0 %1788
  %1790 = vrot.lane.b32.xlu0 %v1483, 16
  %v1791 = vpop.permute.xlu0 %1790
  %1792 = vrot.lane.b32.xlu0 %v1034, 16
  %v1793 = vpop.permute.xlu0 %1792
  %1794 = vrot.lane.b32.xlu0 %v1484, 16
  %v1795 = vpop.permute.xlu0 %1794
  %1796 = vrot.lane.b32.xlu0 %v1035, 16
  %v1797 = vpop.permute.xlu0 %1796
  %1798 = vrot.lane.b32.xlu0 %v1485, 16
  %v1799 = vpop.permute.xlu0 %1798
  %1800 = vrot.lane.b32.xlu0 %v1036, 16
  %v1801 = vpop.permute.xlu0 %1800
  %1802 = vrot.lane.b32.xlu0 %v1486, 16
  %v1803 = vpop.permute.xlu0 %1802
  %1804 = vrot.lane.b32.xlu0 %v1037, 16
  %v1805 = vpop.permute.xlu0 %1804
  %1806 = vrot.lane.b32.xlu0 %v1487, 16
  %v1807 = vpop.permute.xlu0 %1806
  %vm1808 = vcmask 130048
  %v1809 = vsel %vm1808, %v1553, %v1555
  %v1810 = vsel %vm1808, %v1557, %v1559
  %v1811 = vsel %vm1808, %v1561, %v1563
  %v1812 = vsel %vm1808, %v1565, %v1567
  %v1813 = vsel %vm1808, %v1569, %v1571
  %v1814 = vsel %vm1808, %v1573, %v1575
  %v1815 = vsel %vm1808, %v1577, %v1579
  %v1816 = vsel %vm1808, %v1581, %v1583
  %v1817 = vsel %vm1808, %v1585, %v1587
  %v1818 = vsel %vm1808, %v1589, %v1591
  %v1819 = vsel %vm1808, %v1593, %v1595
  %v1820 = vsel %vm1808, %v1597, %v1599
  %v1821 = vsel %vm1808, %v1601, %v1603
  %v1822 = vsel %vm1808, %v1605, %v1607
  %v1823 = vsel %vm1808, %v1609, %v1611
  %v1824 = vsel %vm1808, %v1613, %v1615
  %v1825 = vsel %vm1808, %v1617, %v1619
  %v1826 = vsel %vm1808, %v1621, %v1623
  %v1827 = vsel %vm1808, %v1625, %v1627
  %v1828 = vsel %vm1808, %v1629, %v1631
  %v1829 = vsel %vm1808, %v1633, %v1635
  %v1830 = vsel %vm1808, %v1637, %v1639
  %v1831 = vsel %vm1808, %v1641, %v1643
  %v1832 = vsel %vm1808, %v1645, %v1647
  %v1833 = vsel %vm1808, %v1649, %v1651
  %v1834 = vsel %vm1808, %v1653, %v1655
  %v1835 = vsel %vm1808, %v1657, %v1659
  %v1836 = vsel %vm1808, %v1661, %v1663
  %v1837 = vsel %vm1808, %v1665, %v1667
  %v1838 = vsel %vm1808, %v1669, %v1671
  %v1839 = vsel %vm1808, %v1673, %v1675
  %v1840 = vsel %vm1808, %v1677, %v1679
  %v1841 = vsel %vm1808, %v1681, %v1683
  %v1842 = vsel %vm1808, %v1685, %v1687
  %v1843 = vsel %vm1808, %v1689, %v1691
  %v1844 = vsel %vm1808, %v1693, %v1695
  %v1845 = vsel %vm1808, %v1697, %v1699
  %v1846 = vsel %vm1808, %v1701, %v1703
  %v1847 = vsel %vm1808, %v1705, %v1707
  %v1848 = vsel %vm1808, %v1709, %v1711
  %v1849 = vsel %vm1808, %v1713, %v1715
  %v1850 = vsel %vm1808, %v1717, %v1719
  %v1851 = vsel %vm1808, %v1721, %v1723
  %v1852 = vsel %vm1808, %v1725, %v1727
  %v1853 = vsel %vm1808, %v1729, %v1731
  %v1854 = vsel %vm1808, %v1733, %v1735
  %v1855 = vsel %vm1808, %v1737, %v1739
  %v1856 = vsel %vm1808, %v1741, %v1743
  %v1857 = vsel %vm1808, %v1745, %v1747
  %v1858 = vsel %vm1808, %v1749, %v1751
  %v1859 = vsel %vm1808, %v1753, %v1755
  %v1860 = vsel %vm1808, %v1757, %v1759
  %v1861 = vsel %vm1808, %v1761, %v1763
  %v1862 = vsel %vm1808, %v1765, %v1767
  %v1863 = vsel %vm1808, %v1769, %v1771
  %v1864 = vsel %vm1808, %v1773, %v1775
  %v1865 = vsel %vm1808, %v1777, %v1779
  %v1866 = vsel %vm1808, %v1781, %v1783
  %v1867 = vsel %vm1808, %v1785, %v1787
  %v1868 = vsel %vm1808, %v1789, %v1791
  %v1869 = vsel %vm1808, %v1793, %v1795
  %v1870 = vsel %vm1808, %v1797, %v1799
  %v1871 = vsel %vm1808, %v1801, %v1803
  %v1872 = vsel %vm1808, %v1805, %v1807
  %1937 = vst.msk [vmem:[%s6] sm:$0xff] %vm1038, %v1809
  %1938 = vst.msk [vmem:[%s6 + $0x8] sm:$0xff] %vm1038, %v1810
  %1939 = vst.msk [vmem:[%s6 + $0x10] sm:$0xff] %vm1038, %v1811
  %1940 = vst.msk [vmem:[%s6 + $0x18] sm:$0xff] %vm1038, %v1812
  %1941 = vst.msk [vmem:[%s6 + $0x20] sm:$0xff] %vm1038, %v1813
  %1942 = vst.msk [vmem:[%s6 + $0x28] sm:$0xff] %vm1038, %v1814
  %1943 = vst.msk [vmem:[%s6 + $0x30] sm:$0xff] %vm1038, %v1815
  %1944 = vst.msk [vmem:[%s6 + $0x38] sm:$0xff] %vm1038, %v1816
  %1945 = vst.msk [vmem:[%s6 + $0x40] sm:$0xff] %vm1038, %v1817
  %1946 = vst.msk [vmem:[%s6 + $0x48] sm:$0xff] %vm1038, %v1818
  %1947 = vst.msk [vmem:[%s6 + $0x50] sm:$0xff] %vm1038, %v1819
  %1948 = vst.msk [vmem:[%s6 + $0x58] sm:$0xff] %vm1038, %v1820
  %1949 = vst.msk [vmem:[%s6 + $0x60] sm:$0xff] %vm1038, %v1821
  %1950 = vst.msk [vmem:[%s6 + $0x68] sm:$0xff] %vm1038, %v1822
  %1951 = vst.msk [vmem:[%s6 + $0x70] sm:$0xff] %vm1038, %v1823
  %1952 = vst.msk [vmem:[%s6 + $0x78] sm:$0xff] %vm1038, %v1824
  %1953 = vst.msk [vmem:[%s6 + $0x80] sm:$0xff] %vm1038, %v1825
  %1954 = vst.msk [vmem:[%s6 + $0x88] sm:$0xff] %vm1038, %v1826
  %1955 = vst.msk [vmem:[%s6 + $0x90] sm:$0xff] %vm1038, %v1827
  %1956 = vst.msk [vmem:[%s6 + $0x98] sm:$0xff] %vm1038, %v1828
  %1957 = vst.msk [vmem:[%s6 + $0xa0] sm:$0xff] %vm1038, %v1829
  %1958 = vst.msk [vmem:[%s6 + $0xa8] sm:$0xff] %vm1038, %v1830
  %1959 = vst.msk [vmem:[%s6 + $0xb0] sm:$0xff] %vm1038, %v1831
  %1960 = vst.msk [vmem:[%s6 + $0xb8] sm:$0xff] %vm1038, %v1832
  %1961 = vst.msk [vmem:[%s6 + $0xc0] sm:$0xff] %vm1038, %v1833
  %1962 = vst.msk [vmem:[%s6 + $0xc8] sm:$0xff] %vm1038, %v1834
  %1963 = vst.msk [vmem:[%s6 + $0xd0] sm:$0xff] %vm1038, %v1835
  %1964 = vst.msk [vmem:[%s6 + $0xd8] sm:$0xff] %vm1038, %v1836
  %1965 = vst.msk [vmem:[%s6 + $0xe0] sm:$0xff] %vm1038, %v1837
  %1966 = vst.msk [vmem:[%s6 + $0xe8] sm:$0xff] %vm1038, %v1838
  %1967 = vst.msk [vmem:[%s6 + $0xf0] sm:$0xff] %vm1038, %v1839
  %1968 = vst.msk [vmem:[%s6 + $0xf8] sm:$0xff] %vm1038, %v1840
  %1969 = vst.msk [vmem:[%s6 + $0x100] sm:$0xff] %vm1038, %v1841
  %1970 = vst.msk [vmem:[%s6 + $0x108] sm:$0xff] %vm1038, %v1842
  %1971 = vst.msk [vmem:[%s6 + $0x110] sm:$0xff] %vm1038, %v1843
  %1972 = vst.msk [vmem:[%s6 + $0x118] sm:$0xff] %vm1038, %v1844
  %1973 = vst.msk [vmem:[%s6 + $0x120] sm:$0xff] %vm1038, %v1845
  %1974 = vst.msk [vmem:[%s6 + $0x128] sm:$0xff] %vm1038, %v1846
  %1975 = vst.msk [vmem:[%s6 + $0x130] sm:$0xff] %vm1038, %v1847
  %1976 = vst.msk [vmem:[%s6 + $0x138] sm:$0xff] %vm1038, %v1848
  %1977 = vst.msk [vmem:[%s6 + $0x140] sm:$0xff] %vm1038, %v1849
  %1978 = vst.msk [vmem:[%s6 + $0x148] sm:$0xff] %vm1038, %v1850
  %1979 = vst.msk [vmem:[%s6 + $0x150] sm:$0xff] %vm1038, %v1851
  %1980 = vst.msk [vmem:[%s6 + $0x158] sm:$0xff] %vm1038, %v1852
  %1981 = vst.msk [vmem:[%s6 + $0x160] sm:$0xff] %vm1038, %v1853
  %1982 = vst.msk [vmem:[%s6 + $0x168] sm:$0xff] %vm1038, %v1854
  %1983 = vst.msk [vmem:[%s6 + $0x170] sm:$0xff] %vm1038, %v1855
  %1984 = vst.msk [vmem:[%s6 + $0x178] sm:$0xff] %vm1038, %v1856
  %1985 = vst.msk [vmem:[%s6 + $0x180] sm:$0xff] %vm1038, %v1857
  %1986 = vst.msk [vmem:[%s6 + $0x188] sm:$0xff] %vm1038, %v1858
  %1987 = vst.msk [vmem:[%s6 + $0x190] sm:$0xff] %vm1038, %v1859
  %1988 = vst.msk [vmem:[%s6 + $0x198] sm:$0xff] %vm1038, %v1860
  %1989 = vst.msk [vmem:[%s6 + $0x1a0] sm:$0xff] %vm1038, %v1861
  %1990 = vst.msk [vmem:[%s6 + $0x1a8] sm:$0xff] %vm1038, %v1862
  %1991 = vst.msk [vmem:[%s6 + $0x1b0] sm:$0xff] %vm1038, %v1863
  %1992 = vst.msk [vmem:[%s6 + $0x1b8] sm:$0xff] %vm1038, %v1864
  %1993 = vst.msk [vmem:[%s6 + $0x1c0] sm:$0xff] %vm1038, %v1865
  %1994 = vst.msk [vmem:[%s6 + $0x1c8] sm:$0xff] %vm1038, %v1866
  %1995 = vst.msk [vmem:[%s6 + $0x1d0] sm:$0xff] %vm1038, %v1867
  %1996 = vst.msk [vmem:[%s6 + $0x1d8] sm:$0xff] %vm1038, %v1868
  %1997 = vst.msk [vmem:[%s6 + $0x1e0] sm:$0xff] %vm1038, %v1869
  %1998 = vst.msk [vmem:[%s6 + $0x1e8] sm:$0xff] %vm1038, %v1870
  %1999 = vst.msk [vmem:[%s6 + $0x1f0] sm:$0xff] %vm1038, %v1871
  %2000 = vst.msk [vmem:[%s6 + $0x1f8] sm:$0xff] %vm1038, %v1872
  %2065 = vrot.lane.b32.xlu0 %v847, 80
  %v2066 = vpop.permute.xlu0 %2065
  %2067 = vrot.lane.b32.xlu0 %v849, 80
  %v2068 = vpop.permute.xlu0 %2067
  %2069 = vrot.lane.b32.xlu0 %v851, 80
  %v2070 = vpop.permute.xlu0 %2069
  %2071 = vrot.lane.b32.xlu0 %v853, 80
  %v2072 = vpop.permute.xlu0 %2071
  %2073 = vrot.lane.b32.xlu0 %v855, 80
  %v2074 = vpop.permute.xlu0 %2073
  %2075 = vrot.lane.b32.xlu0 %v857, 80
  %v2076 = vpop.permute.xlu0 %2075
  %2077 = vrot.lane.b32.xlu0 %v859, 80
  %v2078 = vpop.permute.xlu0 %2077
  %2079 = vrot.lane.b32.xlu0 %v861, 80
  %v2080 = vpop.permute.xlu0 %2079
  %2081 = vrot.lane.b32.xlu0 %v863, 80
  %v2082 = vpop.permute.xlu0 %2081
  %2083 = vrot.lane.b32.xlu0 %v865, 80
  %v2084 = vpop.permute.xlu0 %2083
  %2085 = vrot.lane.b32.xlu0 %v867, 80
  %v2086 = vpop.permute.xlu0 %2085
  %2087 = vrot.lane.b32.xlu0 %v869, 80
  %v2088 = vpop.permute.xlu0 %2087
  %2089 = vrot.lane.b32.xlu0 %v871, 80
  %v2090 = vpop.permute.xlu0 %2089
  %2091 = vrot.lane.b32.xlu0 %v873, 80
  %v2092 = vpop.permute.xlu0 %2091
  %2093 = vrot.lane.b32.xlu0 %v875, 80
  %v2094 = vpop.permute.xlu0 %2093
  %2095 = vrot.lane.b32.xlu0 %v877, 80
  %v2096 = vpop.permute.xlu0 %2095
  %2097 = vrot.lane.b32.xlu0 %v879, 80
  %v2098 = vpop.permute.xlu0 %2097
  %2099 = vrot.lane.b32.xlu0 %v881, 80
  %v2100 = vpop.permute.xlu0 %2099
  %2101 = vrot.lane.b32.xlu0 %v883, 80
  %v2102 = vpop.permute.xlu0 %2101
  %2103 = vrot.lane.b32.xlu0 %v885, 80
  %v2104 = vpop.permute.xlu0 %2103
  %2105 = vrot.lane.b32.xlu0 %v887, 80
  %v2106 = vpop.permute.xlu0 %2105
  %2107 = vrot.lane.b32.xlu0 %v889, 80
  %v2108 = vpop.permute.xlu0 %2107
  %2109 = vrot.lane.b32.xlu0 %v891, 80
  %v2110 = vpop.permute.xlu0 %2109
  %2111 = vrot.lane.b32.xlu0 %v893, 80
  %v2112 = vpop.permute.xlu0 %2111
  %2113 = vrot.lane.b32.xlu0 %v895, 80
  %v2114 = vpop.permute.xlu0 %2113
  %2115 = vrot.lane.b32.xlu0 %v897, 80
  %v2116 = vpop.permute.xlu0 %2115
  %2117 = vrot.lane.b32.xlu0 %v899, 80
  %v2118 = vpop.permute.xlu0 %2117
  %2119 = vrot.lane.b32.xlu0 %v901, 80
  %v2120 = vpop.permute.xlu0 %2119
  %2121 = vrot.lane.b32.xlu0 %v903, 80
  %v2122 = vpop.permute.xlu0 %2121
  %2123 = vrot.lane.b32.xlu0 %v905, 80
  %v2124 = vpop.permute.xlu0 %2123
  %2125 = vrot.lane.b32.xlu0 %v907, 80
  %v2126 = vpop.permute.xlu0 %2125
  %2127 = vrot.lane.b32.xlu0 %v909, 80
  %v2128 = vpop.permute.xlu0 %2127
  %2129 = vrot.lane.b32.xlu0 %v911, 80
  %v2130 = vpop.permute.xlu0 %2129
  %2131 = vrot.lane.b32.xlu0 %v913, 80
  %v2132 = vpop.permute.xlu0 %2131
  %2133 = vrot.lane.b32.xlu0 %v915, 80
  %v2134 = vpop.permute.xlu0 %2133
  %2135 = vrot.lane.b32.xlu0 %v917, 80
  %v2136 = vpop.permute.xlu0 %2135
  %2137 = vrot.lane.b32.xlu0 %v919, 80
  %v2138 = vpop.permute.xlu0 %2137
  %2139 = vrot.lane.b32.xlu0 %v921, 80
  %v2140 = vpop.permute.xlu0 %2139
  %2141 = vrot.lane.b32.xlu0 %v923, 80
  %v2142 = vpop.permute.xlu0 %2141
  %2143 = vrot.lane.b32.xlu0 %v925, 80
  %v2144 = vpop.permute.xlu0 %2143
  %2145 = vrot.lane.b32.xlu0 %v927, 80
  %v2146 = vpop.permute.xlu0 %2145
  %2147 = vrot.lane.b32.xlu0 %v929, 80
  %v2148 = vpop.permute.xlu0 %2147
  %2149 = vrot.lane.b32.xlu0 %v931, 80
  %v2150 = vpop.permute.xlu0 %2149
  %2151 = vrot.lane.b32.xlu0 %v933, 80
  %v2152 = vpop.permute.xlu0 %2151
  %2153 = vrot.lane.b32.xlu0 %v935, 80
  %v2154 = vpop.permute.xlu0 %2153
  %2155 = vrot.lane.b32.xlu0 %v937, 80
  %v2156 = vpop.permute.xlu0 %2155
  %2157 = vrot.lane.b32.xlu0 %v939, 80
  %v2158 = vpop.permute.xlu0 %2157
  %2159 = vrot.lane.b32.xlu0 %v941, 80
  %v2160 = vpop.permute.xlu0 %2159
  %2161 = vrot.lane.b32.xlu0 %v943, 80
  %v2162 = vpop.permute.xlu0 %2161
  %2163 = vrot.lane.b32.xlu0 %v945, 80
  %v2164 = vpop.permute.xlu0 %2163
  %2165 = vrot.lane.b32.xlu0 %v947, 80
  %v2166 = vpop.permute.xlu0 %2165
  %2167 = vrot.lane.b32.xlu0 %v949, 80
  %v2168 = vpop.permute.xlu0 %2167
  %2169 = vrot.lane.b32.xlu0 %v951, 80
  %v2170 = vpop.permute.xlu0 %2169
  %2171 = vrot.lane.b32.xlu0 %v953, 80
  %v2172 = vpop.permute.xlu0 %2171
  %2173 = vrot.lane.b32.xlu0 %v955, 80
  %v2174 = vpop.permute.xlu0 %2173
  %2175 = vrot.lane.b32.xlu0 %v957, 80
  %v2176 = vpop.permute.xlu0 %2175
  %2177 = vrot.lane.b32.xlu0 %v959, 80
  %v2178 = vpop.permute.xlu0 %2177
  %2179 = vrot.lane.b32.xlu0 %v961, 80
  %v2180 = vpop.permute.xlu0 %2179
  %2181 = vrot.lane.b32.xlu0 %v963, 80
  %v2182 = vpop.permute.xlu0 %2181
  %2183 = vrot.lane.b32.xlu0 %v965, 80
  %v2184 = vpop.permute.xlu0 %2183
  %2185 = vrot.lane.b32.xlu0 %v967, 80
  %v2186 = vpop.permute.xlu0 %2185
  %2187 = vrot.lane.b32.xlu0 %v969, 80
  %v2188 = vpop.permute.xlu0 %2187
  %2189 = vrot.lane.b32.xlu0 %v971, 80
  %v2190 = vpop.permute.xlu0 %2189
  %2191 = vrot.lane.b32.xlu0 %v973, 80
  %v2192 = vpop.permute.xlu0 %2191
  %vm2257 = vcmask 261120
  %2258 = vst.msk [vmem:[%s7] sm:$0xff] %vm2257, %v2066
  %2259 = vst.msk [vmem:[%s7 + $0x8] sm:$0xff] %vm2257, %v2068
  %2260 = vst.msk [vmem:[%s7 + $0x10] sm:$0xff] %vm2257, %v2070
  %2261 = vst.msk [vmem:[%s7 + $0x18] sm:$0xff] %vm2257, %v2072
  %2262 = vst.msk [vmem:[%s7 + $0x20] sm:$0xff] %vm2257, %v2074
  %2263 = vst.msk [vmem:[%s7 + $0x28] sm:$0xff] %vm2257, %v2076
  %2264 = vst.msk [vmem:[%s7 + $0x30] sm:$0xff] %vm2257, %v2078
  %2265 = vst.msk [vmem:[%s7 + $0x38] sm:$0xff] %vm2257, %v2080
  %2266 = vst.msk [vmem:[%s7 + $0x40] sm:$0xff] %vm2257, %v2082
  %2267 = vst.msk [vmem:[%s7 + $0x48] sm:$0xff] %vm2257, %v2084
  %2268 = vst.msk [vmem:[%s7 + $0x50] sm:$0xff] %vm2257, %v2086
  %2269 = vst.msk [vmem:[%s7 + $0x58] sm:$0xff] %vm2257, %v2088
  %2270 = vst.msk [vmem:[%s7 + $0x60] sm:$0xff] %vm2257, %v2090
  %2271 = vst.msk [vmem:[%s7 + $0x68] sm:$0xff] %vm2257, %v2092
  %2272 = vst.msk [vmem:[%s7 + $0x70] sm:$0xff] %vm2257, %v2094
  %2273 = vst.msk [vmem:[%s7 + $0x78] sm:$0xff] %vm2257, %v2096
  %2274 = vst.msk [vmem:[%s7 + $0x80] sm:$0xff] %vm2257, %v2098
  %2275 = vst.msk [vmem:[%s7 + $0x88] sm:$0xff] %vm2257, %v2100
  %2276 = vst.msk [vmem:[%s7 + $0x90] sm:$0xff] %vm2257, %v2102
  %2277 = vst.msk [vmem:[%s7 + $0x98] sm:$0xff] %vm2257, %v2104
  %2278 = vst.msk [vmem:[%s7 + $0xa0] sm:$0xff] %vm2257, %v2106
  %2279 = vst.msk [vmem:[%s7 + $0xa8] sm:$0xff] %vm2257, %v2108
  %2280 = vst.msk [vmem:[%s7 + $0xb0] sm:$0xff] %vm2257, %v2110
  %2281 = vst.msk [vmem:[%s7 + $0xb8] sm:$0xff] %vm2257, %v2112
  %2282 = vst.msk [vmem:[%s7 + $0xc0] sm:$0xff] %vm2257, %v2114
  %2283 = vst.msk [vmem:[%s7 + $0xc8] sm:$0xff] %vm2257, %v2116
  %2284 = vst.msk [vmem:[%s7 + $0xd0] sm:$0xff] %vm2257, %v2118
  %2285 = vst.msk [vmem:[%s7 + $0xd8] sm:$0xff] %vm2257, %v2120
  %2286 = vst.msk [vmem:[%s7 + $0xe0] sm:$0xff] %vm2257, %v2122
  %2287 = vst.msk [vmem:[%s7 + $0xe8] sm:$0xff] %vm2257, %v2124
  %2288 = vst.msk [vmem:[%s7 + $0xf0] sm:$0xff] %vm2257, %v2126
  %2289 = vst.msk [vmem:[%s7 + $0xf8] sm:$0xff] %vm2257, %v2128
  %2290 = vst.msk [vmem:[%s7 + $0x100] sm:$0xff] %vm2257, %v2130
  %2291 = vst.msk [vmem:[%s7 + $0x108] sm:$0xff] %vm2257, %v2132
  %2292 = vst.msk [vmem:[%s7 + $0x110] sm:$0xff] %vm2257, %v2134
  %2293 = vst.msk [vmem:[%s7 + $0x118] sm:$0xff] %vm2257, %v2136
  %2294 = vst.msk [vmem:[%s7 + $0x120] sm:$0xff] %vm2257, %v2138
  %2295 = vst.msk [vmem:[%s7 + $0x128] sm:$0xff] %vm2257, %v2140
  %2296 = vst.msk [vmem:[%s7 + $0x130] sm:$0xff] %vm2257, %v2142
  %2297 = vst.msk [vmem:[%s7 + $0x138] sm:$0xff] %vm2257, %v2144
  %2298 = vst.msk [vmem:[%s7 + $0x140] sm:$0xff] %vm2257, %v2146
  %2299 = vst.msk [vmem:[%s7 + $0x148] sm:$0xff] %vm2257, %v2148
  %2300 = vst.msk [vmem:[%s7 + $0x150] sm:$0xff] %vm2257, %v2150
  %2301 = vst.msk [vmem:[%s7 + $0x158] sm:$0xff] %vm2257, %v2152
  %2302 = vst.msk [vmem:[%s7 + $0x160] sm:$0xff] %vm2257, %v2154
  %2303 = vst.msk [vmem:[%s7 + $0x168] sm:$0xff] %vm2257, %v2156
  %2304 = vst.msk [vmem:[%s7 + $0x170] sm:$0xff] %vm2257, %v2158
  %2305 = vst.msk [vmem:[%s7 + $0x178] sm:$0xff] %vm2257, %v2160
  %2306 = vst.msk [vmem:[%s7 + $0x180] sm:$0xff] %vm2257, %v2162
  %2307 = vst.msk [vmem:[%s7 + $0x188] sm:$0xff] %vm2257, %v2164
  %2308 = vst.msk [vmem:[%s7 + $0x190] sm:$0xff] %vm2257, %v2166
  %2309 = vst.msk [vmem:[%s7 + $0x198] sm:$0xff] %vm2257, %v2168
  %2310 = vst.msk [vmem:[%s7 + $0x1a0] sm:$0xff] %vm2257, %v2170
  %2311 = vst.msk [vmem:[%s7 + $0x1a8] sm:$0xff] %vm2257, %v2172
  %2312 = vst.msk [vmem:[%s7 + $0x1b0] sm:$0xff] %vm2257, %v2174
  %2313 = vst.msk [vmem:[%s7 + $0x1b8] sm:$0xff] %vm2257, %v2176
  %2314 = vst.msk [vmem:[%s7 + $0x1c0] sm:$0xff] %vm2257, %v2178
  %2315 = vst.msk [vmem:[%s7 + $0x1c8] sm:$0xff] %vm2257, %v2180
  %2316 = vst.msk [vmem:[%s7 + $0x1d0] sm:$0xff] %vm2257, %v2182
  %2317 = vst.msk [vmem:[%s7 + $0x1d8] sm:$0xff] %vm2257, %v2184
  %2318 = vst.msk [vmem:[%s7 + $0x1e0] sm:$0xff] %vm2257, %v2186
  %2319 = vst.msk [vmem:[%s7 + $0x1e8] sm:$0xff] %vm2257, %v2188
  %2320 = vst.msk [vmem:[%s7 + $0x1f0] sm:$0xff] %vm2257, %v2190
  %2321 = vst.msk [vmem:[%s7 + $0x1f8] sm:$0xff] %vm2257, %v2192
  // Predicated region
  $region18: #{tpu_custom_call.1} parent=0 // pred_check
    _
  $region19: #{tpu_custom_call.1} parent=0 // pred_check_branch
    %2323 = sbr.rel (0) target = $region21
  $region20: #{tpu_custom_call.1} parent=0 // pred_region
    _
  $region21: #{tpu_custom_call.1} parent=0 // pred_fallthru
    _
  // Predicated region
  $region22: #{tpu_custom_call.1} parent=0 // pred_check
    _
  $region23: #{tpu_custom_call.1} parent=0 // pred_check_branch
    %2325 = sbr.rel (0) target = $region25
  $region24: #{tpu_custom_call.1} parent=0 // pred_region
    _
  $region25: #{tpu_custom_call.1} parent=0 // pred_fallthru
    _
  // Predicated region
  $region26: #{tpu_custom_call.1} parent=0 // pred_check
    _
  $region27: #{tpu_custom_call.1} parent=0 // pred_check_branch
    %2327 = sbr.rel (0) target = $region29
  $region28: #{tpu_custom_call.1} parent=0 // pred_region
    _
  $region29: #{tpu_custom_call.1} parent=0 // pred_fallthru
    _
  // Predicated region
  $region30: #{tpu_custom_call.1} parent=0 // pred_check
    _
  $region31: #{tpu_custom_call.1} parent=0 // pred_check_branch
    %2329 = sbr.rel (0) target = $region33
  $region32: #{tpu_custom_call.1} parent=0 // pred_region
    _
  $region33: #{tpu_custom_call.1} parent=0 // pred_fallthru
    _
  // Predicated region
  $region34: #{tpu_custom_call.1} parent=0 // pred_check
    _
  $region35: #{tpu_custom_call.1} parent=0 // pred_check_branch
    %2331 = sbr.rel (0) target = $region37
  $region36: #{tpu_custom_call.1} parent=0 // pred_region
    _
  $region37: #{tpu_custom_call.1} parent=0 // pred_fallthru
    _
  // Predicated region
  $region38: #{tpu_custom_call.1} parent=0 // pred_check
    _
  $region39: #{tpu_custom_call.1} parent=0 // pred_check_branch
    %2333 = sbr.rel (0) target = $region41
  $region40: #{tpu_custom_call.1} parent=0 // pred_region
    _
  $region41: #{tpu_custom_call.1} parent=0 // pred_fallthru
    _
  // Predicated region
  $region42: #{tpu_custom_call.1} parent=0 // pred_check
    _
  $region43: #{tpu_custom_call.1} parent=0 // pred_check_branch
    %2335 = sbr.rel (0) target = $region45
  $region44: #{tpu_custom_call.1} parent=0 // pred_region
    _
  $region45: #{tpu_custom_call.1} parent=0 // pred_fallthru
    _
  // Predicated region
  $region46: #{tpu_custom_call.1} parent=0 // pred_check
    _
  $region47: #{tpu_custom_call.1} parent=0 // pred_check_branch
    %2337 = sbr.rel (0) target = $region49
  $region48: #{tpu_custom_call.1} parent=0 // pred_region
    _
  $region49: #{tpu_custom_call.1} parent=0 // pred_fallthru
    _

</llo_original>
